<compile_context>
chip_gen: v7x
topology: tpu7x:2x2x1
jax: 0.10.0
libtpu: 0.0.40
codegen_flags: <defaults>
</compile_context>

<pallas_src>
import functools

import jax
import jax.numpy as jnp
from jax.experimental import pallas as pl
from jax.experimental.pallas import tpu as pltpu


def _round_up(n, m):
    return (n + m - 1) // m * m


def _pad2d(a, rows, cols):
    pr, pc = rows - a.shape[0], cols - a.shape[1]
    if pr == 0 and pc == 0:
        return a
    return jnp.pad(a, ((0, pr), (0, pc)))


def chessnet_kernel(x_ref,
                    w1_ref, w2_ref, w3_ref, w4_ref,
                    b_ref,
                    o_ref,
                    *, activation, widths):
    """Fused 4-layer MLP forward on one batch tile.

    x_ref:  (tile, in_p) f32  -- cast to bf16 in-kernel (VPU, hidden under MXU)
    w*_ref: bf16 (in_p,h1p)/(h1p,h2p)/(h2p,h3p)/(h3p,out_p), VMEM-resident
    b_ref:  (1, h1p+h2p+h3p+out_p) f32 fused biases
    o_ref:  (tile, out_p) bf16 lane-dense output tile
    """
    h1p, h2p, h3p, out_p = widths
    act = (lambda v: jnp.maximum(v, 0.0)) if activation == "relu" else jnp.tanh
    # NOTE: tanh routes 3 * tile * padded-width evaluations through the single
    # EUP slot; relu (pure VALU) is strongly preferred for throughput.

    # Static, 128-aligned slices of the fused bias vector.
    b1 = b_ref[:, 0:h1p]
    b2 = b_ref[:, h1p:h1p + h2p]
    b3 = b_ref[:, h1p + h2p:h1p + h2p + h3p]
    b4 = b_ref[:, h1p + h2p + h3p:h1p + h2p + h3p + out_p]

    x = x_ref[...].astype(jnp.bfloat16)  # in-kernel cast: no wrapper pad/cast pass

    # fc1 + activation (drop1 is identity at inference)
    h = act(jnp.dot(x, w1_ref[...], preferred_element_type=jnp.float32) + b1)
    # fc2 + activation (drop2 is identity at inference)
    h = act(jnp.dot(h.astype(jnp.bfloat16), w2_ref[...],
                    preferred_element_type=jnp.float32) + b2)
    # fc3 + activation (drop3 is identity at inference)
    h = act(jnp.dot(h.astype(jnp.bfloat16), w3_ref[...],
                    preferred_element_type=jnp.float32) + b3)
    # fc4 (no activation)
    out = (jnp.dot(h.astype(jnp.bfloat16), w4_ref[...],
                   preferred_element_type=jnp.float32) + b4)

    o_ref[...] = out.astype(o_ref.dtype)  # bf16 writeback, full (8,128) tiles
    # TODO(synk): training-mode dropout (pltpu.prng_seed/prng_random_bits +
    # 1/(1-p) scaling); the inference path implemented here is exact.


def chessnet_forward(x, params, activation="relu", batch_tile=1024):
    """params: w1..w4 as (in, out) f32, b1..b4 as (1, out) or (out,) f32."""
    batch, in_dim = x.shape
    h1 = params["w1"].shape[1]
    h2 = params["w2"].shape[1]
    h3 = params["w3"].shape[1]
    out_dim = params["w4"].shape[1]

    # Hidden/output widths lane-dense (multiples of 128); input only rounded to
    # the 8-sublane granule (no 2x HBM inflation of the x stream).
    in_p = _round_up(in_dim, 8)
    h1p = _round_up(h1, 128)
    h2p = _round_up(h2, 128)
    h3p = _round_up(h3, 128)
    out_p = _round_up(out_dim, 128)

    # Weights: zero-pad, cast to bf16 (MXU-native); exact through matmul+act.
    w1 = _pad2d(params["w1"], in_p, h1p).astype(jnp.bfloat16)
    w2 = _pad2d(params["w2"], h1p, h2p).astype(jnp.bfloat16)
    w3 = _pad2d(params["w3"], h2p, h3p).astype(jnp.bfloat16)
    w4 = _pad2d(params["w4"], h3p, out_p).astype(jnp.bfloat16)

    # Fuse biases into a single (1, h1p+h2p+h3p+out_p) f32 operand.
    b = jnp.concatenate([
        _pad2d(params["b1"].reshape(1, -1), 1, h1p),
        _pad2d(params["b2"].reshape(1, -1), 1, h2p),
        _pad2d(params["b3"].reshape(1, -1), 1, h3p),
        _pad2d(params["b4"].reshape(1, -1), 1, out_p),
    ], axis=1).astype(jnp.float32)

    # Batch tiling: big tiles amortize the ~0.35 us/step overhead, but cap so
    # the grid has >=2 steps whenever possible (v7x: 2 TensorCores).
    half = _round_up(max(pl.cdiv(batch, 2), 1), 8)
    tile = max(8, min(batch_tile, half))
    padded_batch = _round_up(batch, tile)

    x_p = x.astype(jnp.float32)
    if padded_batch != batch or in_p != in_dim:
        x_p = jnp.pad(x_p, ((0, padded_batch - batch), (0, in_p - in_dim)))

    grid = (padded_batch // tile,)
    kernel = functools.partial(chessnet_kernel, activation=activation,
                               widths=(h1p, h2p, h3p, out_p))

    # Tile-derived VMEM budget (double-buffered x/out + weights + bias), with
    # slack, capped safely below v7x's 64 MiB physical VMEM.
    w_bytes = (in_p * h1p + h1p * h2p + h2p * h3p + h3p * out_p) * 2
    b_bytes = (h1p + h2p + h3p + out_p) * 4

    def _vmem_limit(weight_bufs):
        working = (2 * tile * in_p * 4          # x tile, f32, double-buffered
                   + 2 * tile * out_p * 2       # out tile, bf16, double-buffered
                   + weight_bufs * (w_bytes + b_bytes))
        return int(min(max(2 * working + (1 << 20), 8 << 20), 48 << 20))

    def _call(single_buffer_weights):
        wkw = ({"pipeline_mode": pl.Buffered(1)}
               if single_buffer_weights else {})
        in_specs = [
            # x: tiled along batch, double-buffered by the pipeline.
            pl.BlockSpec((tile, in_p), lambda i: (i, 0)),
            # weights / fused bias: constant index_map -> VMEM-resident;
            # single-buffered to avoid wasting a second pipeline buffer.
            pl.BlockSpec((in_p, h1p), lambda i: (0, 0), **wkw),
            pl.BlockSpec((h1p, h2p), lambda i: (0, 0), **wkw),
            pl.BlockSpec((h2p, h3p), lambda i: (0, 0), **wkw),
            pl.BlockSpec((h3p, out_p), lambda i: (0, 0), **wkw),
            pl.BlockSpec((1, b.shape[1]), lambda i: (0, 0), **wkw),
        ]
        return pl.pallas_call(
            kernel,
            out_shape=jax.ShapeDtypeStruct((padded_batch, out_p), jnp.bfloat16),
            grid=grid,
            in_specs=in_specs,
            out_specs=pl.BlockSpec((tile, out_p), lambda i: (i, 0)),
            compiler_params=pltpu.CompilerParams(
                dimension_semantics=("parallel",),
                vmem_limit_bytes=_vmem_limit(1 if single_buffer_weights else 2),
            ),
        )(x_p, w1, w2, w3, w4, b)

    try:
        out = jax.block_until_ready(_call(True))
    except Exception:
        # Fallback: identical kernel without pipeline_mode (pure perf option).
        out = _call(False)

    return out[:batch, :out_dim].astype(jnp.float32)


def init_params(key, input_dim, h1, h2, h3, out_dim=3):
    """Mimics nn.Linear's U(-1/sqrt(fan_in), 1/sqrt(fan_in)); weights as (in, out)."""
    dims = [(input_dim, h1), (h1, h2), (h2, h3), (h3, out_dim)]
    params = {}
    for i, (fan_in, fan_out) in enumerate(dims, start=1):
        key, kw, kb = jax.random.split(key, 3)
        bound = 1.0 / jnp.sqrt(float(fan_in))
        params[f"w{i}"] = jax.random.uniform(
            kw, (fan_in, fan_out), jnp.float32, -bound, bound)
        params[f"b{i}"] = jax.random.uniform(
            kb, (1, fan_out), jnp.float32, -bound, bound)
    return params


def reference_forward(x, params, activation="relu"):
    act = (lambda v: jnp.maximum(v, 0.0)) if activation == "relu" else jnp.tanh
    h = act(x @ params["w1"] + params["b1"])
    h = act(h @ params["w2"] + params["b2"])
    h = act(h @ params["w3"] + params["b3"])
    return h @ params["w4"] + params["b4"]


if __name__ == "__main__":
    key = jax.random.PRNGKey(0)
    kx, kp = jax.random.split(key)

    # Small shapes consistent with the module: (batch, input_dim) -> 3 logits.
    batch, input_dim = 16, 64
    h1, h2, h3 = 256, 128, 64   # ChessNet defaults

    x = jax.random.normal(kx, (batch, input_dim), jnp.float32)
    params = init_params(kp, input_dim, h1, h2, h3)

    # Default batch_tile=1024; the >=2-grid-step cap makes this a tile of 8
    # rows and a 2-step grid at this toy batch, exercising the pipeline.
    out = chessnet_forward(x, params, activation="relu")
    out = jax.block_until_ready(out)

    ref = reference_forward(x, params, activation="relu")
    assert out.shape == (batch, 3), out.shape
    # bf16 matmul inputs + bf16 output with f32 accumulation -> ~1% error budget.
    assert jnp.allclose(out, ref, atol=5e-2, rtol=5e-2), "mismatch vs reference"

    print("KERNEL_OK")
</pallas_src>

<mosaic_0001>
module attributes {stable_mosaic.version = 11 : i64} {
  func.func @chessnet_kernel(%arg0: i32, %arg1: memref<8x64xf32, #tpu.memory_space<vmem>>, %arg2: memref<64x256xbf16, #tpu.memory_space<vmem>>, %arg3: memref<256x128xbf16, #tpu.memory_space<vmem>>, %arg4: memref<128x128xbf16, #tpu.memory_space<vmem>>, %arg5: memref<128x128xbf16, #tpu.memory_space<vmem>>, %arg6: memref<1x640xf32, #tpu.memory_space<vmem>>, %arg7: memref<8x128xbf16, #tpu.memory_space<vmem>>) attributes {dimension_semantics = [#tpu.dimension_semantics<parallel>], iteration_bounds = array<i64: 2>, scalar_prefetch = 0 : i64, scratch_operands = 0 : i64, tpu.core_type = #tpu.core_type<tc>, window_params = [{transform_indices = @transform_0, window_bounds = array<i64: 8, 64>}, {pipeline_mode = #tpu.pipeline_mode<synchronous>, transform_indices = @transform_1, window_bounds = array<i64: 64, 256>}, {pipeline_mode = #tpu.pipeline_mode<synchronous>, transform_indices = @transform_2, window_bounds = array<i64: 256, 128>}, {pipeline_mode = #tpu.pipeline_mode<synchronous>, transform_indices = @transform_3, window_bounds = array<i64: 128, 128>}, {pipeline_mode = #tpu.pipeline_mode<synchronous>, transform_indices = @transform_4, window_bounds = array<i64: 128, 128>}, {pipeline_mode = #tpu.pipeline_mode<synchronous>, transform_indices = @transform_5, window_bounds = array<i64: 1, 640>}, {transform_indices = @transform_6, window_bounds = array<i64: 8, 128>}]} {
    %c0 = arith.constant 0 : index
    %c0_0 = arith.constant 0 : index
    %0 = vector.load %arg6[%c0, %c0_0] : memref<1x640xf32, #tpu.memory_space<vmem>>, vector<1x256xf32>
    %c0_1 = arith.constant 0 : index
    %c256 = arith.constant 256 : index
    %1 = vector.load %arg6[%c0_1, %c256] : memref<1x640xf32, #tpu.memory_space<vmem>>, vector<1x128xf32>
    %c0_2 = arith.constant 0 : index
    %c384 = arith.constant 384 : index
    %2 = vector.load %arg6[%c0_2, %c384] : memref<1x640xf32, #tpu.memory_space<vmem>>, vector<1x128xf32>
    %c0_3 = arith.constant 0 : index
    %c512 = arith.constant 512 : index
    %3 = vector.load %arg6[%c0_3, %c512] : memref<1x640xf32, #tpu.memory_space<vmem>>, vector<1x128xf32>
    %c0_4 = arith.constant 0 : index
    %c0_5 = arith.constant 0 : index
    %4 = vector.load %arg1[%c0_4, %c0_5] : memref<8x64xf32, #tpu.memory_space<vmem>>, vector<8x64xf32>
    %5 = arith.truncf %4 : vector<8x64xf32> to vector<8x64xbf16>
    %c0_6 = arith.constant 0 : index
    %c0_7 = arith.constant 0 : index
    %6 = vector.load %arg2[%c0_6, %c0_7] : memref<64x256xbf16, #tpu.memory_space<vmem>>, vector<64x256xbf16>
    %cst = arith.constant dense<0.000000e+00> : vector<8x256xf32>
    %7 = tpu.matmul %5, %6, %cst {dimension_numbers = #tpu.dot_dimension_numbers<[1], [0], [0], [1], [0, 0, 1, 1], [], []>} : vector<8x64xbf16>, vector<64x256xbf16>, vector<8x256xf32> -> vector<8x256xf32>
    %8 = vector.broadcast %0 : vector<1x256xf32> to vector<8x256xf32>
    %9 = arith.addf %7, %8 : vector<8x256xf32>
    %cst_8 = arith.constant 0.000000e+00 : f32
    %10 = vector.broadcast %cst_8 : f32 to vector<8x256xf32>
    %11 = arith.maximumf %9, %10 : vector<8x256xf32>
    %12 = arith.truncf %11 : vector<8x256xf32> to vector<8x256xbf16>
    %c0_9 = arith.constant 0 : index
    %c0_10 = arith.constant 0 : index
    %13 = vector.load %arg3[%c0_9, %c0_10] : memref<256x128xbf16, #tpu.memory_space<vmem>>, vector<256x128xbf16>
    %cst_11 = arith.constant dense<0.000000e+00> : vector<8x128xf32>
    %14 = tpu.matmul %12, %13, %cst_11 {dimension_numbers = #tpu.dot_dimension_numbers<[1], [0], [0], [1], [0, 0, 1, 1], [], []>} : vector<8x256xbf16>, vector<256x128xbf16>, vector<8x128xf32> -> vector<8x128xf32>
    %15 = vector.broadcast %1 : vector<1x128xf32> to vector<8x128xf32>
    %16 = arith.addf %14, %15 : vector<8x128xf32>
    %cst_12 = arith.constant 0.000000e+00 : f32
    %17 = vector.broadcast %cst_12 : f32 to vector<8x128xf32>
    %18 = arith.maximumf %16, %17 : vector<8x128xf32>
    %19 = arith.truncf %18 : vector<8x128xf32> to vector<8x128xbf16>
    %c0_13 = arith.constant 0 : index
    %c0_14 = arith.constant 0 : index
    %20 = vector.load %arg4[%c0_13, %c0_14] : memref<128x128xbf16, #tpu.memory_space<vmem>>, vector<128x128xbf16>
    %cst_15 = arith.constant dense<0.000000e+00> : vector<8x128xf32>
    %21 = tpu.matmul %19, %20, %cst_15 {dimension_numbers = #tpu.dot_dimension_numbers<[1], [0], [0], [1], [0, 0, 1, 1], [], []>} : vector<8x128xbf16>, vector<128x128xbf16>, vector<8x128xf32> -> vector<8x128xf32>
    %22 = vector.broadcast %2 : vector<1x128xf32> to vector<8x128xf32>
    %23 = arith.addf %21, %22 : vector<8x128xf32>
    %cst_16 = arith.constant 0.000000e+00 : f32
    %24 = vector.broadcast %cst_16 : f32 to vector<8x128xf32>
    %25 = arith.maximumf %23, %24 : vector<8x128xf32>
    %26 = arith.truncf %25 : vector<8x128xf32> to vector<8x128xbf16>
    %c0_17 = arith.constant 0 : index
    %c0_18 = arith.constant 0 : index
    %27 = vector.load %arg5[%c0_17, %c0_18] : memref<128x128xbf16, #tpu.memory_space<vmem>>, vector<128x128xbf16>
    %cst_19 = arith.constant dense<0.000000e+00> : vector<8x128xf32>
    %28 = tpu.matmul %26, %27, %cst_19 {dimension_numbers = #tpu.dot_dimension_numbers<[1], [0], [0], [1], [0, 0, 1, 1], [], []>} : vector<8x128xbf16>, vector<128x128xbf16>, vector<8x128xf32> -> vector<8x128xf32>
    %29 = vector.broadcast %3 : vector<1x128xf32> to vector<8x128xf32>
    %30 = arith.addf %28, %29 : vector<8x128xf32>
    %31 = arith.truncf %30 : vector<8x128xf32> to vector<8x128xbf16>
    %c0_20 = arith.constant 0 : index
    %c0_21 = arith.constant 0 : index
    %32 = vector.load %arg7[%c0_20, %c0_21] : memref<8x128xbf16, #tpu.memory_space<vmem>>, vector<8x128xbf16>
    tpu.vector_store %arg7[%c0_20, %c0_21], %31 {strides = array<i32>} : memref<8x128xbf16, #tpu.memory_space<vmem>>, vector<8x128xbf16>,
    return
  }
  func.func @transform_0(%arg0: i32) -> (i32, i32) {
    %c0_i32 = arith.constant 0 : i32
    %c0_i32_0 = arith.constant 0 : i32
    return %arg0, %c0_i32 : i32, i32
  }
  func.func @transform_1(%arg0: i32) -> (i32, i32) {
    %c0_i32 = arith.constant 0 : i32
    %c0_i32_0 = arith.constant 0 : i32
    %c0_i32_1 = arith.constant 0 : i32
    return %c0_i32, %c0_i32_0 : i32, i32
  }
  func.func @transform_2(%arg0: i32) -> (i32, i32) {
    %c0_i32 = arith.constant 0 : i32
    %c0_i32_0 = arith.constant 0 : i32
    %c0_i32_1 = arith.constant 0 : i32
    return %c0_i32, %c0_i32_0 : i32, i32
  }
  func.func @transform_3(%arg0: i32) -> (i32, i32) {
    %c0_i32 = arith.constant 0 : i32
    %c0_i32_0 = arith.constant 0 : i32
    %c0_i32_1 = arith.constant 0 : i32
    return %c0_i32, %c0_i32_0 : i32, i32
  }
  func.func @transform_4(%arg0: i32) -> (i32, i32) {
    %c0_i32 = arith.constant 0 : i32
    %c0_i32_0 = arith.constant 0 : i32
    %c0_i32_1 = arith.constant 0 : i32
    return %c0_i32, %c0_i32_0 : i32, i32
  }
  func.func @transform_5(%arg0: i32) -> (i32, i32) {
    %c0_i32 = arith.constant 0 : i32
    %c0_i32_0 = arith.constant 0 : i32
    %c0_i32_1 = arith.constant 0 : i32
    return %c0_i32, %c0_i32_0 : i32, i32
  }
  func.func @transform_6(%arg0: i32) -> (i32, i32) {
    %c0_i32 = arith.constant 0 : i32
    %c0_i32_0 = arith.constant 0 : i32
    return %arg0, %c0_i32 : i32, i32
  }
}

module attributes {stable_mosaic.version = 11 : i64} {
  func.func @chessnet_kernel(%arg0: i32, %arg1: memref<8x64xf32, #tpu.memory_space<vmem>>, %arg2: memref<64x256xbf16, #tpu.memory_space<vmem>>, %arg3: memref<256x128xbf16, #tpu.memory_space<vmem>>, %arg4: memref<128x128xbf16, #tpu.memory_space<vmem>>, %arg5: memref<128x128xbf16, #tpu.memory_space<vmem>>, %arg6: memref<1x640xf32, #tpu.memory_space<vmem>>, %arg7: memref<8x128xbf16, #tpu.memory_space<vmem>>) attributes {dimension_semantics = [#tpu.dimension_semantics<parallel>], iteration_bounds = array<i64: 2>, scalar_prefetch = 0 : i64, scratch_operands = 0 : i64, tpu.core_type = #tpu.core_type<tc>, window_params = [{transform_indices = @transform_0, window_bounds = array<i64: 8, 64>}, {pipeline_mode = #tpu.pipeline_mode<synchronous>, transform_indices = @transform_1, window_bounds = array<i64: 64, 256>}, {pipeline_mode = #tpu.pipeline_mode<synchronous>, transform_indices = @transform_2, window_bounds = array<i64: 256, 128>}, {pipeline_mode = #tpu.pipeline_mode<synchronous>, transform_indices = @transform_3, window_bounds = array<i64: 128, 128>}, {pipeline_mode = #tpu.pipeline_mode<synchronous>, transform_indices = @transform_4, window_bounds = array<i64: 128, 128>}, {pipeline_mode = #tpu.pipeline_mode<synchronous>, transform_indices = @transform_5, window_bounds = array<i64: 1, 640>}, {transform_indices = @transform_6, window_bounds = array<i64: 8, 128>}]} {
    %c0 = arith.constant 0 : index
    %c0_0 = arith.constant 0 : index
    %0 = vector.load %arg6[%c0, %c0_0] : memref<1x640xf32, #tpu.memory_space<vmem>>, vector<1x256xf32>
    %c0_1 = arith.constant 0 : index
    %c256 = arith.constant 256 : index
    %1 = vector.load %arg6[%c0_1, %c256] : memref<1x640xf32, #tpu.memory_space<vmem>>, vector<1x128xf32>
    %c0_2 = arith.constant 0 : index
    %c384 = arith.constant 384 : index
    %2 = vector.load %arg6[%c0_2, %c384] : memref<1x640xf32, #tpu.memory_space<vmem>>, vector<1x128xf32>
    %c0_3 = arith.constant 0 : index
    %c512 = arith.constant 512 : index
    %3 = vector.load %arg6[%c0_3, %c512] : memref<1x640xf32, #tpu.memory_space<vmem>>, vector<1x128xf32>
    %c0_4 = arith.constant 0 : index
    %c0_5 = arith.constant 0 : index
    %4 = vector.load %arg1[%c0_4, %c0_5] : memref<8x64xf32, #tpu.memory_space<vmem>>, vector<8x64xf32>
    %5 = arith.truncf %4 : vector<8x64xf32> to vector<8x64xbf16>
    %c0_6 = arith.constant 0 : index
    %c0_7 = arith.constant 0 : index
    %6 = vector.load %arg2[%c0_6, %c0_7] : memref<64x256xbf16, #tpu.memory_space<vmem>>, vector<64x256xbf16>
    %cst = arith.constant dense<0.000000e+00> : vector<8x256xf32>
    %7 = tpu.matmul %5, %6, %cst {dimension_numbers = #tpu.dot_dimension_numbers<[1], [0], [0], [1], [0, 0, 1, 1], [], []>} : vector<8x64xbf16>, vector<64x256xbf16>, vector<8x256xf32> -> vector<8x256xf32>
    %8 = vector.broadcast %0 : vector<1x256xf32> to vector<8x256xf32>
    %9 = arith.addf %7, %8 : vector<8x256xf32>
    %cst_8 = arith.constant 0.000000e+00 : f32
    %10 = vector.broadcast %cst_8 : f32 to vector<8x256xf32>
    %11 = arith.maximumf %9, %10 : vector<8x256xf32>
    %12 = arith.truncf %11 : vector<8x256xf32> to vector<8x256xbf16>
    %c0_9 = arith.constant 0 : index
    %c0_10 = arith.constant 0 : index
    %13 = vector.load %arg3[%c0_9, %c0_10] : memref<256x128xbf16, #tpu.memory_space<vmem>>, vector<256x128xbf16>
    %cst_11 = arith.constant dense<0.000000e+00> : vector<8x128xf32>
    %14 = tpu.matmul %12, %13, %cst_11 {dimension_numbers = #tpu.dot_dimension_numbers<[1], [0], [0], [1], [0, 0, 1, 1], [], []>} : vector<8x256xbf16>, vector<256x128xbf16>, vector<8x128xf32> -> vector<8x128xf32>
    %15 = vector.broadcast %1 : vector<1x128xf32> to vector<8x128xf32>
    %16 = arith.addf %14, %15 : vector<8x128xf32>
    %cst_12 = arith.constant 0.000000e+00 : f32
    %17 = vector.broadcast %cst_12 : f32 to vector<8x128xf32>
    %18 = arith.maximumf %16, %17 : vector<8x128xf32>
    %19 = arith.truncf %18 : vector<8x128xf32> to vector<8x128xbf16>
    %c0_13 = arith.constant 0 : index
    %c0_14 = arith.constant 0 : index
    %20 = vector.load %arg4[%c0_13, %c0_14] : memref<128x128xbf16, #tpu.memory_space<vmem>>, vector<128x128xbf16>
    %cst_15 = arith.constant dense<0.000000e+00> : vector<8x128xf32>
    %21 = tpu.matmul %19, %20, %cst_15 {dimension_numbers = #tpu.dot_dimension_numbers<[1], [0], [0], [1], [0, 0, 1, 1], [], []>} : vector<8x128xbf16>, vector<128x128xbf16>, vector<8x128xf32> -> vector<8x128xf32>
    %22 = vector.broadcast %2 : vector<1x128xf32> to vector<8x128xf32>
    %23 = arith.addf %21, %22 : vector<8x128xf32>
    %cst_16 = arith.constant 0.000000e+00 : f32
    %24 = vector.broadcast %cst_16 : f32 to vector<8x128xf32>
    %25 = arith.maximumf %23, %24 : vector<8x128xf32>
    %26 = arith.truncf %25 : vector<8x128xf32> to vector<8x128xbf16>
    %c0_17 = arith.constant 0 : index
    %c0_18 = arith.constant 0 : index
    %27 = vector.load %arg5[%c0_17, %c0_18] : memref<128x128xbf16, #tpu.memory_space<vmem>>, vector<128x128xbf16>
    %cst_19 = arith.constant dense<0.000000e+00> : vector<8x128xf32>
    %28 = tpu.matmul %26, %27, %cst_19 {dimension_numbers = #tpu.dot_dimension_numbers<[1], [0], [0], [1], [0, 0, 1, 1], [], []>} : vector<8x128xbf16>, vector<128x128xbf16>, vector<8x128xf32> -> vector<8x128xf32>
    %29 = vector.broadcast %3 : vector<1x128xf32> to vector<8x128xf32>
    %30 = arith.addf %28, %29 : vector<8x128xf32>
    %31 = arith.truncf %30 : vector<8x128xf32> to vector<8x128xbf16>
    %c0_20 = arith.constant 0 : index
    %c0_21 = arith.constant 0 : index
    %32 = vector.load %arg7[%c0_20, %c0_21] : memref<8x128xbf16, #tpu.memory_space<vmem>>, vector<8x128xbf16>
    tpu.vector_store %arg7[%c0_20, %c0_21], %31 {strides = array<i32>} : memref<8x128xbf16, #tpu.memory_space<vmem>>, vector<8x128xbf16>,
    return
  }
  func.func @transform_0(%arg0: i32) -> (i32, i32) {
    %c0_i32 = arith.constant 0 : i32
    %c0_i32_0 = arith.constant 0 : i32
    return %arg0, %c0_i32 : i32, i32
  }
  func.func @transform_1(%arg0: i32) -> (i32, i32) {
    %c0_i32 = arith.constant 0 : i32
    %c0_i32_0 = arith.constant 0 : i32
    %c0_i32_1 = arith.constant 0 : i32
    return %c0_i32, %c0_i32_0 : i32, i32
  }
  func.func @transform_2(%arg0: i32) -> (i32, i32) {
    %c0_i32 = arith.constant 0 : i32
    %c0_i32_0 = arith.constant 0 : i32
    %c0_i32_1 = arith.constant 0 : i32
    return %c0_i32, %c0_i32_0 : i32, i32
  }
  func.func @transform_3(%arg0: i32) -> (i32, i32) {
    %c0_i32 = arith.constant 0 : i32
    %c0_i32_0 = arith.constant 0 : i32
    %c0_i32_1 = arith.constant 0 : i32
    return %c0_i32, %c0_i32_0 : i32, i32
  }
  func.func @transform_4(%arg0: i32) -> (i32, i32) {
    %c0_i32 = arith.constant 0 : i32
    %c0_i32_0 = arith.constant 0 : i32
    %c0_i32_1 = arith.constant 0 : i32
    return %c0_i32, %c0_i32_0 : i32, i32
  }
  func.func @transform_5(%arg0: i32) -> (i32, i32) {
    %c0_i32 = arith.constant 0 : i32
    %c0_i32_0 = arith.constant 0 : i32
    %c0_i32_1 = arith.constant 0 : i32
    return %c0_i32, %c0_i32_0 : i32, i32
  }
  func.func @transform_6(%arg0: i32) -> (i32, i32) {
    %c0_i32 = arith.constant 0 : i32
    %c0_i32_0 = arith.constant 0 : i32
    return %arg0, %c0_i32 : i32, i32
  }
}

</mosaic_0001>

<llo_original>
// kernel: tpu_custom_call.1
$region0: #{tpu_custom_call.1}
  #allocation0 [shape = 'u32[]', space=smem, size = 0x4, offset = 0x4, fixed_abs, tag = 'smem constant byte address 0x4 - core index']
  #allocation1 [shape = 'u32[144,128]{1,0:T(1,128)}', space=vmem, size = 0x12000, scoped, tag = 'internal scratch']
  %s0 = inlined_call_operand.hbm [shape: f32[16,64], index: 0, kind: input, shape index: {}]
  %s1 = inlined_call_operand.hbm [shape: bf16[64,256], index: 1, kind: input, shape index: {}]
  %s2 = inlined_call_operand.hbm [shape: bf16[256,128], index: 2, kind: input, shape index: {}]
  %s3 = inlined_call_operand.hbm [shape: bf16[128,128], index: 3, kind: input, shape index: {}]
  %s4 = inlined_call_operand.hbm [shape: bf16[128,128], index: 4, kind: input, shape index: {}]
  %s5 = inlined_call_operand.vmem [shape: f32[1,640], index: 5, kind: input, shape index: {}]
  %s6 = inlined_call_operand.hbm [shape: bf16[16,128], index: 6, kind: output, shape index: {}]
  %s7 = sld [smem:[#allocation0]]
  $region77: #{tpu_custom_call.1} parent=0
    _
  %s9 = ssub.s32 1, %s7
  %s10 = scalar_select 0, %s9, %s7
  $region1: #{tpu_custom_call.1} parent=0
    #allocation2 [shape = 'u8[8192]{0}', space=vmem, size = 0x2000, scoped, tag = 'input window, operand 0']
    #allocation3 [shape = 's32[2]{0}', space=sflag, size = 0x8, scoped, tag = 'scoped memory for tpu_custom_call.1']
    #allocation4 [shape = 's32[2]{0}', space=sflag, size = 0x8, scoped, tag = 'scoped memory for tpu_custom_call.1']
    #allocation5 [shape = 'u8[32768]{0}', space=vmem, size = 0x8000, scoped, tag = 'input window, operand 1, single buffered']
    #allocation6 [shape = 's32[1]{0}', space=sflag, size = 0x4, scoped, tag = 'scoped memory for tpu_custom_call.1']
    #allocation7 [shape = 'u8[65536]{0}', space=vmem, size = 0x10000, scoped, tag = 'input window, operand 2, single buffered']
    #allocation8 [shape = 'u8[32768]{0}', space=vmem, size = 0x8000, scoped, tag = 'input window, operand 3, single buffered']
    #allocation9 [shape = 's32[1]{0}', space=sflag, size = 0x4, scoped, tag = 'scoped memory for tpu_custom_call.1']
    #allocation10 [shape = 'u8[32768]{0}', space=vmem, size = 0x8000, scoped, tag = 'input window, operand 4, single buffered']
    #allocation11 [shape = 'u8[4096]{0}', space=vmem, size = 0x1000, scoped, tag = 'output window, operand 0']
    %11 = vsyncpa [#allocation3], 0
    %s12 = scalar_lea.sflag [#allocation3], 1
    %13 = vsyncpa %s12, 0
    %14 = vsyncpa [#allocation6], 0
    %15 = vsyncpa [#allocation9], 0
    %16 = vsyncpa [#allocation4], 0
    %s17 = scalar_lea.sflag [#allocation4], 1
    %18 = vsyncpa %s17, 0
    loop: start=0, step=1, limit=4
    $region2: #{tpu_custom_call.1} parent=1 // loop_pre_header
      _
    $region3: #{tpu_custom_call.1} parent=1 // loop_header
      %s20 = sphi 0, %s24
      %p21 = scmp.ge.s32.totalorder %s20, 4
      %s30 = sphi 0, %s32
      %s33 = sphi 0, %s30
      %s34 = sphi 0, %s33
      %s50 = sphi 0, %s34
      %s54 = sphi 0, %s54
      %s56 = sphi 0, %s54
      %s57 = sphi 0, %s56
      %s71 = sphi 0, %s57
      %s75 = sphi 0, %s75
      %s77 = sphi 0, %s75
      %s78 = sphi 0, %s77
      %s92 = sphi 0, %s78
      %s96 = sphi 0, %s96
      %s98 = sphi 0, %s96
      %s99 = sphi 0, %s98
      %s113 = sphi 0, %s99
      %s117 = sphi 0, %s117
      %s119 = sphi 0, %s117
      %s120 = sphi 0, %s119
      %s134 = sphi 0, %s120
      %s138 = sphi 0, %s138
      %s140 = sphi 0, %s138
      %s141 = sphi 0, %s140
      %s155 = sphi 0, %s141
      %s161 = sphi 0, %s163
      %s164 = sphi 0, %s161
      %s165 = sphi 0, %s164
      %s181 = sphi 0, %s165
    $region4: #{tpu_custom_call.1} parent=1 // loop_header_branch
      %23 = sbr.rel (%p21) target = $region8
    $region5: #{tpu_custom_call.1} parent=1 // loop_body
      %s25 = ssub.s32 %s20, 1
      %s26 = ssub.s32 %s20, 2
      %s27 = sadd.s32 %s20, 1
      %s28 = ssub.s32 %s20, %s27
      %p29 = scmp.eq.s32.totalorder %s28, 0
      %s31 = sadd.s32 %s30, 1
      %s32 = scalar_select %p29, %s30, %s31
      %p35 = pneg %p29
      %p36 = scmp.eq.s32.totalorder %s20, 1
      %p37 = por %p35, %p36
      %p38 = scmp.ne.s32.totalorder %s30, %s33
      %p39 = scmp.eq.s32.totalorder %s20, 0
      %p40 = por %p38, %p39
      %p41 = scmp.ne.s32.totalorder %s30, %s33
      %p42 = scmp.eq.s32.totalorder %s25, 1
      %p43 = por %p41, %p42
      %p44 = scmp.ne.s32.totalorder %s33, %s34
      %p45 = scmp.eq.s32.totalorder %s25, 0
      %p46 = por %p44, %p45
      %p47 = scmp.ne.s32.totalorder %s33, %s34
      %p48 = scmp.eq.s32.totalorder %s26, 1
      %p49 = por %p47, %p48
      %p51 = scmp.ne.s32.totalorder %s34, %s50
      %p52 = scmp.eq.s32.totalorder %s26, 0
      %p53 = por %p51, %p52
      %s55 = sadd.s32 %s54, 1
      %p58 = scmp.eq.s32.totalorder %s20, 1
      %p59 = scmp.ne.s32.totalorder %s54, %s56
      %p60 = scmp.eq.s32.totalorder %s20, 0
      %p61 = por %p59, %p60
      %p62 = scmp.ne.s32.totalorder %s54, %s56
      %p63 = scmp.eq.s32.totalorder %s25, 1
      %p64 = por %p62, %p63
      %p65 = scmp.ne.s32.totalorder %s56, %s57
      %p66 = scmp.eq.s32.totalorder %s25, 0
      %p67 = por %p65, %p66
      %p68 = scmp.ne.s32.totalorder %s56, %s57
      %p69 = scmp.eq.s32.totalorder %s26, 1
      %p70 = por %p68, %p69
      %p72 = scmp.ne.s32.totalorder %s57, %s71
      %p73 = scmp.eq.s32.totalorder %s26, 0
      %p74 = por %p72, %p73
      %s76 = sadd.s32 %s75, 1
      %p79 = scmp.eq.s32.totalorder %s20, 1
      %p80 = scmp.ne.s32.totalorder %s75, %s77
      %p81 = scmp.eq.s32.totalorder %s20, 0
      %p82 = por %p80, %p81
      %p83 = scmp.ne.s32.totalorder %s75, %s77
      %p84 = scmp.eq.s32.totalorder %s25, 1
      %p85 = por %p83, %p84
      %p86 = scmp.ne.s32.totalorder %s77, %s78
      %p87 = scmp.eq.s32.totalorder %s25, 0
      %p88 = por %p86, %p87
      %p89 = scmp.ne.s32.totalorder %s77, %s78
      %p90 = scmp.eq.s32.totalorder %s26, 1
      %p91 = por %p89, %p90
      %p93 = scmp.ne.s32.totalorder %s78, %s92
      %p94 = scmp.eq.s32.totalorder %s26, 0
      %p95 = por %p93, %p94
      %s97 = sadd.s32 %s96, 1
      %p100 = scmp.eq.s32.totalorder %s20, 1
      %p101 = scmp.ne.s32.totalorder %s96, %s98
      %p102 = scmp.eq.s32.totalorder %s20, 0
      %p103 = por %p101, %p102
      %p104 = scmp.ne.s32.totalorder %s96, %s98
      %p105 = scmp.eq.s32.totalorder %s25, 1
      %p106 = por %p104, %p105
      %p107 = scmp.ne.s32.totalorder %s98, %s99
      %p108 = scmp.eq.s32.totalorder %s25, 0
      %p109 = por %p107, %p108
      %p110 = scmp.ne.s32.totalorder %s98, %s99
      %p111 = scmp.eq.s32.totalorder %s26, 1
      %p112 = por %p110, %p111
      %p114 = scmp.ne.s32.totalorder %s99, %s113
      %p115 = scmp.eq.s32.totalorder %s26, 0
      %p116 = por %p114, %p115
      %s118 = sadd.s32 %s117, 1
      %p121 = scmp.eq.s32.totalorder %s20, 1
      %p122 = scmp.ne.s32.totalorder %s117, %s119
      %p123 = scmp.eq.s32.totalorder %s20, 0
      %p124 = por %p122, %p123
      %p125 = scmp.ne.s32.totalorder %s117, %s119
      %p126 = scmp.eq.s32.totalorder %s25, 1
      %p127 = por %p125, %p126
      %p128 = scmp.ne.s32.totalorder %s119, %s120
      %p129 = scmp.eq.s32.totalorder %s25, 0
      %p130 = por %p128, %p129
      %p131 = scmp.ne.s32.totalorder %s119, %s120
      %p132 = scmp.eq.s32.totalorder %s26, 1
      %p133 = por %p131, %p132
      %p135 = scmp.ne.s32.totalorder %s120, %s134
      %p136 = scmp.eq.s32.totalorder %s26, 0
      %p137 = por %p135, %p136
      %s139 = sadd.s32 %s138, 1
      %p142 = scmp.eq.s32.totalorder %s20, 1
      %p143 = scmp.ne.s32.totalorder %s138, %s140
      %p144 = scmp.eq.s32.totalorder %s20, 0
      %p145 = por %p143, %p144
      %p146 = scmp.ne.s32.totalorder %s138, %s140
      %p147 = scmp.eq.s32.totalorder %s25, 1
      %p148 = por %p146, %p147
      %p149 = scmp.ne.s32.totalorder %s140, %s141
      %p150 = scmp.eq.s32.totalorder %s25, 0
      %p151 = por %p149, %p150
      %p152 = scmp.ne.s32.totalorder %s140, %s141
      %p153 = scmp.eq.s32.totalorder %s26, 1
      %p154 = por %p152, %p153
      %p156 = scmp.ne.s32.totalorder %s141, %s155
      %p157 = scmp.eq.s32.totalorder %s26, 0
      %p158 = por %p156, %p157
      %s159 = ssub.s32 %s20, %s27
      %p160 = scmp.eq.s32.totalorder %s159, 0
      %s162 = sadd.s32 %s161, 1
      %s163 = scalar_select %p160, %s161, %s162
      %p166 = pneg %p160
      %p167 = scmp.eq.s32.totalorder %s20, 1
      %p168 = por %p166, %p167
      %p169 = scmp.ne.s32.totalorder %s161, %s164
      %p170 = scmp.eq.s32.totalorder %s20, 0
      %p171 = por %p169, %p170
      %p172 = scmp.ne.s32.totalorder %s161, %s164
      %p173 = scmp.eq.s32.totalorder %s25, 1
      %p174 = por %p172, %p173
      %p175 = scmp.ne.s32.totalorder %s164, %s165
      %p176 = scmp.eq.s32.totalorder %s25, 0
      %p177 = por %p175, %p176
      %p178 = scmp.ne.s32.totalorder %s164, %s165
      %p179 = scmp.eq.s32.totalorder %s26, 1
      %p180 = por %p178, %p179
      %p182 = scmp.ne.s32.totalorder %s165, %s181
      %p183 = scmp.eq.s32.totalorder %s26, 0
      %p184 = por %p182, %p183
      %p185 = scmp.le.s32.totalorder 1, %s20
      %p186 = scmp.lt.s32.totalorder %s20, 3
      %p187 = pnand %p185, %p186
      %p188 = pneg %p187
      // Predicated region
      $region9: #{tpu_custom_call.1} parent=5 // pred_check
        _
      $region10: #{tpu_custom_call.1} parent=5 // pred_check_branch
        %190 = sbr.rel (%p187) target = $region12
      $region11: #{tpu_custom_call.1} parent=5 // pred_region
        %s191 = ssub.s32 %s20, 1
        // Predicated region
        $region13: #{tpu_custom_call.1} parent=11 // pred_check
          %p192 = pneg %p67
        $region14: #{tpu_custom_call.1} parent=11 // pred_check_branch
          %194 = sbr.rel (%p192) target = $region16
        $region15: #{tpu_custom_call.1} parent=11 // pred_region
          %s196 = ssub.s32 1024, 1024
          %197 = vsyncadd [#allocation6], %s196
          %s198 = sshll.u32 [#allocation5], 4
          %s199 = int_to_ptr.vmem [resolvable:$true] %s198
          %204 = dma.hbm_to_vmem [thread:$0]  %s1, 1024, %s199, [#allocation6], 128, 128, 8
        $region16: #{tpu_custom_call.1} parent=11 // pred_fallthru
          _
        // Predicated region
        $region17: #{tpu_custom_call.1} parent=11 // pred_check
          %p205 = pneg %p88
        $region18: #{tpu_custom_call.1} parent=11 // pred_check_branch
          %207 = sbr.rel (%p205) target = $region20
        $region19: #{tpu_custom_call.1} parent=11 // pred_region
          %s209 = ssub.s32 2048, 2048
          %210 = vsyncadd [#allocation6], %s209
          %s211 = sshll.u32 [#allocation7], 4
          %s212 = int_to_ptr.vmem [resolvable:$true] %s211
          %217 = dma.hbm_to_vmem [thread:$0]  %s2, 2048, %s212, [#allocation6], 64, 64, 4
        $region20: #{tpu_custom_call.1} parent=11 // pred_fallthru
          _
        // Predicated region
        $region21: #{tpu_custom_call.1} parent=11 // pred_check
          %p218 = pneg %p109
        $region22: #{tpu_custom_call.1} parent=11 // pred_check_branch
          %220 = sbr.rel (%p218) target = $region24
        $region23: #{tpu_custom_call.1} parent=11 // pred_region
          %s222 = ssub.s32 1024, 1024
          %223 = vsyncadd [#allocation9], %s222
          %s224 = sshll.u32 [#allocation8], 4
          %s225 = int_to_ptr.vmem [resolvable:$true] %s224
          %230 = dma.hbm_to_vmem [thread:$0]  %s3, 1024, %s225, [#allocation9], 64, 64, 4
        $region24: #{tpu_custom_call.1} parent=11 // pred_fallthru
          _
        // Predicated region
        $region25: #{tpu_custom_call.1} parent=11 // pred_check
          %p231 = pneg %p130
        $region26: #{tpu_custom_call.1} parent=11 // pred_check_branch
          %233 = sbr.rel (%p231) target = $region28
        $region27: #{tpu_custom_call.1} parent=11 // pred_region
          %s235 = ssub.s32 1024, 1024
          %236 = vsyncadd [#allocation9], %s235
          %s237 = sshll.u32 [#allocation10], 4
          %s238 = int_to_ptr.vmem [resolvable:$true] %s237
          %243 = dma.hbm_to_vmem [thread:$0]  %s4, 1024, %s238, [#allocation9], 64, 64, 4
        $region28: #{tpu_custom_call.1} parent=11 // pred_fallthru
          _
        // Predicated region
        $region29: #{tpu_custom_call.1} parent=11 // pred_check
          %p244 = pneg %p151
        $region30: #{tpu_custom_call.1} parent=11 // pred_check_branch
          %246 = sbr.rel (%p244) target = $region32
        $region31: #{tpu_custom_call.1} parent=11 // pred_region
          _
        $region32: #{tpu_custom_call.1} parent=11 // pred_fallthru
          _
      $region12: #{tpu_custom_call.1} parent=5 // pred_fallthru
        _
      %p247 = scmp.lt.s32.totalorder %s20, 2
      // Predicated region
      $region33: #{tpu_custom_call.1} parent=5 // pred_check
        %p248 = pneg %p247
      $region34: #{tpu_custom_call.1} parent=5 // pred_check_branch
        %250 = sbr.rel (%p248) target = $region36
      $region35: #{tpu_custom_call.1} parent=5 // pred_region
        // Predicated region
        $region37: #{tpu_custom_call.1} parent=35 // pred_check
          %p251 = pneg %p40
        $region38: #{tpu_custom_call.1} parent=35 // pred_check_branch
          %253 = sbr.rel (%p251) target = $region40
        $region39: #{tpu_custom_call.1} parent=35 // pred_region
          %s254 = sand.u32 %s30, 1
          %s255 = scalar_lea.sflag [#allocation3], %s254
          %s256 = sand.u32 %s30, 1
          %s257 = smul.addr %s256, 8
          %s258 = scalar_lea.vmem [#allocation2], %s257
          %s260 = ssub.s32 128, 128
          %261 = vsyncadd %s255, %s260
          %s262 = smul.addr %s20, 128
          %s263 = scalar_lea.hbm %s0, %s262
          %s265 = sshll.u32 %s258, 4
          %s266 = int_to_ptr.vmem [resolvable:$true] %s265
          %268 = dma.hbm_to_vmem [thread:$0]  %s263, 128, %s266, %s255
        $region40: #{tpu_custom_call.1} parent=35 // pred_fallthru
          _
      $region36: #{tpu_custom_call.1} parent=5 // pred_fallthru
        _
      %p269 = scmp.le.s32.totalorder 1, %s20
      %p270 = scmp.lt.s32.totalorder %s20, 3
      %p271 = pnand %p269, %p270
      %p272 = pneg %p271
      // Predicated region
      $region41: #{tpu_custom_call.1} parent=5 // pred_check
        _
      $region42: #{tpu_custom_call.1} parent=5 // pred_check_branch
        %274 = sbr.rel (%p271) target = $region44
      $region43: #{tpu_custom_call.1} parent=5 // pred_region
        %s275 = ssub.s32 %s20, 1
        %s276 = sand.u32 %s33, 1
        %s277 = scalar_lea.sflag [#allocation3], %s276
        %s278 = sand.u32 %s33, 1
        %s279 = smul.addr %s278, 8
        %s280 = scalar_lea.vmem [#allocation2], %s279
        // Predicated region
        $region45: #{tpu_custom_call.1} parent=43 // pred_check
          %p281 = pneg %p46
        $region46: #{tpu_custom_call.1} parent=43 // pred_check_branch
          %283 = sbr.rel (%p281) target = $region48
        $region47: #{tpu_custom_call.1} parent=43 // pred_region
          %284 = dma.done %s277, 128
        $region48: #{tpu_custom_call.1} parent=43 // pred_fallthru
          _
        // Predicated region
        $region49: #{tpu_custom_call.1} parent=43 // pred_check
          %p285 = pneg %p67
        $region50: #{tpu_custom_call.1} parent=43 // pred_check_branch
          %287 = sbr.rel (%p285) target = $region52
        $region51: #{tpu_custom_call.1} parent=43 // pred_region
          %288 = dma.done [#allocation6], 1024
        $region52: #{tpu_custom_call.1} parent=43 // pred_fallthru
          _
        // Predicated region
        $region53: #{tpu_custom_call.1} parent=43 // pred_check
          %p289 = pneg %p88
        $region54: #{tpu_custom_call.1} parent=43 // pred_check_branch
          %291 = sbr.rel (%p289) target = $region56
        $region55: #{tpu_custom_call.1} parent=43 // pred_region
          %292 = dma.done [#allocation6], 2048
        $region56: #{tpu_custom_call.1} parent=43 // pred_fallthru
          _
        // Predicated region
        $region57: #{tpu_custom_call.1} parent=43 // pred_check
          %p293 = pneg %p109
        $region58: #{tpu_custom_call.1} parent=43 // pred_check_branch
          %295 = sbr.rel (%p293) target = $region60
        $region59: #{tpu_custom_call.1} parent=43 // pred_region
          %296 = dma.done [#allocation9], 1024
        $region60: #{tpu_custom_call.1} parent=43 // pred_fallthru
          _
        // Predicated region
        $region61: #{tpu_custom_call.1} parent=43 // pred_check
          %p297 = pneg %p130
        $region62: #{tpu_custom_call.1} parent=43 // pred_check_branch
          %299 = sbr.rel (%p297) target = $region64
        $region63: #{tpu_custom_call.1} parent=43 // pred_region
          %300 = dma.done [#allocation9], 1024
        $region64: #{tpu_custom_call.1} parent=43 // pred_fallthru
          _
        %s301 = sand.u32 %s33, 1
        %s302 = scalar_lea.sflag [#allocation3], %s301
        %s303 = sand.u32 %s33, 1
        %s304 = smul.addr %s303, 8
        %s305 = scalar_lea.vmem [#allocation2], %s304
        %p306 = pneg %p46
        %p307 = pneg %p43
        %p308 = pneg %p67
        %p309 = pneg %p64
        %p310 = pneg %p88
        %p311 = pneg %p85
        %p312 = pneg %p109
        %p313 = pneg %p106
        %p314 = pneg %p130
        %p315 = pneg %p127
        %p316 = pneg %p151
        %p317 = pneg %p148
        %p318 = pneg %p177
        %p319 = pneg %p174
        %s320 = sand.u32 %s164, 1
        %s321 = scalar_lea.sflag [#allocation4], %s320
        %s322 = sand.u32 %s164, 1
        %s323 = smul.addr %s322, 4
        %s324 = scalar_lea.vmem [#allocation11], %s323
        %v326 = vld [vmem:[%s5] sm:$0x3]
        %v327 = vld [vmem:[%s5 + $0x2] sm:$0x1]
        %v328 = vld [vmem:[%s5 + $0x3] sm:$0x1]
        %v329 = vld [vmem:[%s5 + $0x4] sm:$0x1]
        %v330 = vld [vmem:[%s280] sm:$0xff]
        %v331 = vpack.c.bf16 %v330, %v330
        %v332 = vld [vmem:[#allocation5] sm:$0xff]
        %v333 = vld [vmem:[#allocation5 + $0x8] sm:$0xff]
        %v334 = vld [vmem:[#allocation5 + $0x10] sm:$0xff]
        %v335 = vld [vmem:[#allocation5 + $0x18] sm:$0xff]
        %v336 = vld [vmem:[#allocation5 + $0x20] sm:$0xff]
        %v337 = vld [vmem:[#allocation5 + $0x28] sm:$0xff]
        %v338 = vld [vmem:[#allocation5 + $0x30] sm:$0xff]
        %v339 = vld [vmem:[#allocation5 + $0x38] sm:$0xff]
        %v341 = vlaneseq
        %v342 = vshrl.u32 %v341, 7
        %v343 = vsub.s32 0, %v342
        %v344 = vrot.slane %v326, %v343
        %v345 = vlaneseq
        %v346 = vshrl.u32 %v345, 7
        %v347 = vsub.s32 1, %v346
        %v348 = vrot.slane %v326, %v347
        %v359 = vunpack.c.l.b16 %v332
        %v360 = vunpack.c.h.b16 %v332
        %v361 = vunpack.c.l.b16 %v333
        %v362 = vunpack.c.h.b16 %v333
        %v363 = vunpack.c.l.b16 %v334
        %v364 = vunpack.c.h.b16 %v334
        %v365 = vunpack.c.l.b16 %v335
        %v366 = vunpack.c.h.b16 %v335
        %v367 = vunpack.c.l.b16 %v336
        %v368 = vunpack.c.h.b16 %v336
        %v369 = vunpack.c.l.b16 %v337
        %v370 = vunpack.c.h.b16 %v337
        %v371 = vunpack.c.l.b16 %v338
        %v372 = vunpack.c.h.b16 %v338
        %v373 = vunpack.c.l.b16 %v339
        %v374 = vunpack.c.h.b16 %v339
        %v375 = vpack.c.b16 %v361, %v359
        %v376 = vpack.c.b16 %v362, %v360
        %v377 = vpack.c.b16 %v365, %v363
        %v378 = vpack.c.b16 %v366, %v364
        %v379 = vpack.c.b16 %v369, %v367
        %v380 = vpack.c.b16 %v370, %v368
        %v381 = vpack.c.b16 %v373, %v371
        %v382 = vpack.c.b16 %v374, %v372
        %vm391 = vcmask 523264
        %v393 = vsel %vm391, %v331, 0
        %395 = vmatprep.subr.bf16.mxu0 %v376
        %396 = vmatpush1.bf16.msra.mxu0 %v375
        %397 = vmatprep.subr.bf16.mxu0 %v378
        %398 = vmatpush1.bf16.msra.mxu0 %v377
        %399 = vmatprep.subr.bf16.mxu0 %v380
        %400 = vmatpush1.bf16.msra.mxu0 %v379
        %401 = vmatprep.subr.bf16.mxu0 %v382
        %402 = vmatpush1.bf16.msra.mxu0 %v381
        %403 = vmatprep.subr.bf16.mxu0 0
        %404 = vmatpush1.bf16.msra.mxu0 0
        %405 = vmatprep.subr.bf16.mxu0 0
        %406 = vmatpush1.bf16.msra.mxu0 0
        %407 = vmatprep.subr.bf16.mxu0 0
        %408 = vmatpush1.bf16.msra.mxu0 0
        %409 = vmatprep.subr.bf16.mxu0 0
        %410 = vmatpush1.bf16.msra.mxu0 0
        %411 = vmatprep.subr.bf16.mxu0 0
        %412 = vmatpush1.bf16.msra.mxu0 0
        %413 = vmatprep.subr.bf16.mxu0 0
        %414 = vmatpush1.bf16.msra.mxu0 0
        %415 = vmatprep.subr.bf16.mxu0 0
        %416 = vmatpush1.bf16.msra.mxu0 0
        %417 = vmatprep.subr.bf16.mxu0 0
        %418 = vmatpush1.bf16.msra.mxu0 0
        %419 = vmatprep.subr.bf16.mxu0 0
        %420 = vmatpush1.bf16.msra.mxu0 0
        %421 = vmatprep.subr.bf16.mxu0 0
        %422 = vmatpush1.bf16.msra.mxu0 0
        %423 = vmatprep.subr.bf16.mxu0 0
        %424 = vmatpush1.bf16.msra.mxu0 0
        %425 = vmatprep.subr.bf16.mxu0 0
        %426 = vmatpush1.bf16.msra.mxu0 0
        %427 = vmatprep.mubr.bf16.mxu0 0
        %428 = vmatmul.mubr.bf16.gmra.mrb[0].mxu0 %v393
        %v429 = vpop.f32.mrb[0].mxu0
        %v430 = vadd.f32 %v344, %v429
        %v431 = vpop.f32.mrb[0].mxu0
        %v432 = vadd.f32 %v348, %v431
        %v433 = vpop.f32.mrb[0].mxu0
        %v434 = vpop.f32.mrb[0].mxu0
        %435 = vdwg.mxu0
        %v436 = vmax.f32 %v430, 0.0
        %v437 = vmax.f32 %v432, 0.0
        %v438 = vpack.c.bf16 %v436, %v436
        %v439 = vpack.c.bf16 %v437, %v437
        %v440 = vld [vmem:[#allocation7] sm:$0xf]
        %v441 = vld [vmem:[#allocation7 + $0x4] sm:$0xf]
        %v442 = vld [vmem:[#allocation7 + $0x8] sm:$0xf]
        %v443 = vld [vmem:[#allocation7 + $0xc] sm:$0xf]
        %v444 = vld [vmem:[#allocation7 + $0x10] sm:$0xf]
        %v445 = vld [vmem:[#allocation7 + $0x14] sm:$0xf]
        %v446 = vld [vmem:[#allocation7 + $0x18] sm:$0xf]
        %v447 = vld [vmem:[#allocation7 + $0x1c] sm:$0xf]
        %v448 = vld [vmem:[#allocation7 + $0x20] sm:$0xf]
        %v449 = vld [vmem:[#allocation7 + $0x24] sm:$0xf]
        %v450 = vld [vmem:[#allocation7 + $0x28] sm:$0xf]
        %v451 = vld [vmem:[#allocation7 + $0x2c] sm:$0xf]
        %v452 = vld [vmem:[#allocation7 + $0x30] sm:$0xf]
        %v453 = vld [vmem:[#allocation7 + $0x34] sm:$0xf]
        %v454 = vld [vmem:[#allocation7 + $0x38] sm:$0xf]
        %v455 = vld [vmem:[#allocation7 + $0x3c] sm:$0xf]
        %v456 = vld [vmem:[#allocation7 + $0x40] sm:$0xf]
        %v457 = vld [vmem:[#allocation7 + $0x44] sm:$0xf]
        %v458 = vld [vmem:[#allocation7 + $0x48] sm:$0xf]
        %v459 = vld [vmem:[#allocation7 + $0x4c] sm:$0xf]
        %v460 = vld [vmem:[#allocation7 + $0x50] sm:$0xf]
        %v461 = vld [vmem:[#allocation7 + $0x54] sm:$0xf]
        %v462 = vld [vmem:[#allocation7 + $0x58] sm:$0xf]
        %v463 = vld [vmem:[#allocation7 + $0x5c] sm:$0xf]
        %v464 = vld [vmem:[#allocation7 + $0x60] sm:$0xf]
        %v465 = vld [vmem:[#allocation7 + $0x64] sm:$0xf]
        %v466 = vld [vmem:[#allocation7 + $0x68] sm:$0xf]
        %v467 = vld [vmem:[#allocation7 + $0x6c] sm:$0xf]
        %v468 = vld [vmem:[#allocation7 + $0x70] sm:$0xf]
        %v469 = vld [vmem:[#allocation7 + $0x74] sm:$0xf]
        %v470 = vld [vmem:[#allocation7 + $0x78] sm:$0xf]
        %v471 = vld [vmem:[#allocation7 + $0x7c] sm:$0xf]
        %v473 = vlaneseq
        %v474 = vshrl.u32 %v473, 7
        %v475 = vsub.s32 0, %v474
        %v476 = vrot.slane %v327, %v475
        %v510 = vunpack.c.l.b16 %v440
        %v511 = vunpack.c.l.b16 %v441
        %v512 = vunpack.c.l.b16 %v442
        %v513 = vunpack.c.l.b16 %v443
        %v514 = vunpack.c.l.b16 %v444
        %v515 = vunpack.c.l.b16 %v445
        %v516 = vunpack.c.l.b16 %v446
        %v517 = vunpack.c.l.b16 %v447
        %v518 = vunpack.c.l.b16 %v448
        %v519 = vunpack.c.l.b16 %v449
        %v520 = vunpack.c.l.b16 %v450
        %v521 = vunpack.c.l.b16 %v451
        %v522 = vunpack.c.l.b16 %v452
        %v523 = vunpack.c.l.b16 %v453
        %v524 = vunpack.c.l.b16 %v454
        %v525 = vunpack.c.l.b16 %v455
        %v526 = vunpack.c.l.b16 %v456
        %v527 = vunpack.c.l.b16 %v457
        %v528 = vunpack.c.l.b16 %v458
        %v529 = vunpack.c.l.b16 %v459
        %v530 = vunpack.c.l.b16 %v460
        %v531 = vunpack.c.l.b16 %v461
        %v532 = vunpack.c.l.b16 %v462
        %v533 = vunpack.c.l.b16 %v463
        %v534 = vunpack.c.l.b16 %v464
        %v535 = vunpack.c.l.b16 %v465
        %v536 = vunpack.c.l.b16 %v466
        %v537 = vunpack.c.l.b16 %v467
        %v538 = vunpack.c.l.b16 %v468
        %v539 = vunpack.c.l.b16 %v469
        %v540 = vunpack.c.l.b16 %v470
        %v541 = vunpack.c.l.b16 %v471
        %v542 = vpack.c.b16 %v511, %v510
        %v543 = vpack.c.b16 %v513, %v512
        %v544 = vpack.c.b16 %v515, %v514
        %v545 = vpack.c.b16 %v517, %v516
        %v546 = vpack.c.b16 %v519, %v518
        %v547 = vpack.c.b16 %v521, %v520
        %v548 = vpack.c.b16 %v523, %v522
        %v549 = vpack.c.b16 %v525, %v524
        %v550 = vpack.c.b16 %v527, %v526
        %v551 = vpack.c.b16 %v529, %v528
        %v552 = vpack.c.b16 %v531, %v530
        %v553 = vpack.c.b16 %v533, %v532
        %v554 = vpack.c.b16 %v535, %v534
        %v555 = vpack.c.b16 %v537, %v536
        %v556 = vpack.c.b16 %v539, %v538
        %v557 = vpack.c.b16 %v541, %v540
        %574 = vmatprep.subr.bf16.mxu0 0
        %575 = vmatpush1.bf16.msra.mxu0 %v542
        %576 = vmatprep.subr.bf16.mxu0 0
        %577 = vmatpush1.bf16.msra.mxu0 %v543
        %578 = vmatprep.subr.bf16.mxu0 0
        %579 = vmatpush1.bf16.msra.mxu0 %v544
        %580 = vmatprep.subr.bf16.mxu0 0
        %581 = vmatpush1.bf16.msra.mxu0 %v545
        %582 = vmatprep.subr.bf16.mxu0 0
        %583 = vmatpush1.bf16.msra.mxu0 %v546
        %584 = vmatprep.subr.bf16.mxu0 0
        %585 = vmatpush1.bf16.msra.mxu0 %v547
        %586 = vmatprep.subr.bf16.mxu0 0
        %587 = vmatpush1.bf16.msra.mxu0 %v548
        %588 = vmatprep.subr.bf16.mxu0 0
        %589 = vmatpush1.bf16.msra.mxu0 %v549
        %590 = vmatprep.subr.bf16.mxu0 0
        %591 = vmatpush1.bf16.msra.mxu0 %v550
        %592 = vmatprep.subr.bf16.mxu0 0
        %593 = vmatpush1.bf16.msra.mxu0 %v551
        %594 = vmatprep.subr.bf16.mxu0 0
        %595 = vmatpush1.bf16.msra.mxu0 %v552
        %596 = vmatprep.subr.bf16.mxu0 0
        %597 = vmatpush1.bf16.msra.mxu0 %v553
        %598 = vmatprep.subr.bf16.mxu0 0
        %599 = vmatpush1.bf16.msra.mxu0 %v554
        %600 = vmatprep.subr.bf16.mxu0 0
        %601 = vmatpush1.bf16.msra.mxu0 %v555
        %602 = vmatprep.subr.bf16.mxu0 0
        %603 = vmatpush1.bf16.msra.mxu0 %v556
        %604 = vmatprep.subr.bf16.mxu0 0
        %605 = vmatpush1.bf16.msra.mxu0 %v557
        %606 = vmatprep.mubr.bf16.mxu0 %v439
        %607 = vmatmul.mubr.bf16.gmra.mrb[0].mxu0 %v438
        %v608 = vpop.f32.mrb[0].mxu0
        %v609 = vadd.f32 %v476, %v608
        %v610 = vpop.f32.mrb[0].mxu0
        %v611 = vpop.f32.mrb[0].mxu0
        %v612 = vpop.f32.mrb[0].mxu0
        %613 = vdwg.mxu0
        %v614 = vmax.f32 %v609, 0.0
        %v615 = vpack.c.bf16 %v614, %v614
        %v616 = vld [vmem:[#allocation8] sm:$0xf]
        %v617 = vld [vmem:[#allocation8 + $0x4] sm:$0xf]
        %v618 = vld [vmem:[#allocation8 + $0x8] sm:$0xf]
        %v619 = vld [vmem:[#allocation8 + $0xc] sm:$0xf]
        %v620 = vld [vmem:[#allocation8 + $0x10] sm:$0xf]
        %v621 = vld [vmem:[#allocation8 + $0x14] sm:$0xf]
        %v622 = vld [vmem:[#allocation8 + $0x18] sm:$0xf]
        %v623 = vld [vmem:[#allocation8 + $0x1c] sm:$0xf]
        %v624 = vld [vmem:[#allocation8 + $0x20] sm:$0xf]
        %v625 = vld [vmem:[#allocation8 + $0x24] sm:$0xf]
        %v626 = vld [vmem:[#allocation8 + $0x28] sm:$0xf]
        %v627 = vld [vmem:[#allocation8 + $0x2c] sm:$0xf]
        %v628 = vld [vmem:[#allocation8 + $0x30] sm:$0xf]
        %v629 = vld [vmem:[#allocation8 + $0x34] sm:$0xf]
        %v630 = vld [vmem:[#allocation8 + $0x38] sm:$0xf]
        %v631 = vld [vmem:[#allocation8 + $0x3c] sm:$0xf]
        %v633 = vlaneseq
        %v634 = vshrl.u32 %v633, 7
        %v635 = vsub.s32 0, %v634
        %v636 = vrot.slane %v328, %v635
        %v654 = vunpack.c.l.b16 %v616
        %v655 = vunpack.c.l.b16 %v617
        %v656 = vunpack.c.l.b16 %v618
        %v657 = vunpack.c.l.b16 %v619
        %v658 = vunpack.c.l.b16 %v620
        %v659 = vunpack.c.l.b16 %v621
        %v660 = vunpack.c.l.b16 %v622
        %v661 = vunpack.c.l.b16 %v623
        %v662 = vunpack.c.l.b16 %v624
        %v663 = vunpack.c.l.b16 %v625
        %v664 = vunpack.c.l.b16 %v626
        %v665 = vunpack.c.l.b16 %v627
        %v666 = vunpack.c.l.b16 %v628
        %v667 = vunpack.c.l.b16 %v629
        %v668 = vunpack.c.l.b16 %v630
        %v669 = vunpack.c.l.b16 %v631
        %v670 = vpack.c.b16 %v655, %v654
        %v671 = vpack.c.b16 %v657, %v656
        %v672 = vpack.c.b16 %v659, %v658
        %v673 = vpack.c.b16 %v661, %v660
        %v674 = vpack.c.b16 %v663, %v662
        %v675 = vpack.c.b16 %v665, %v664
        %v676 = vpack.c.b16 %v667, %v666
        %v677 = vpack.c.b16 %v669, %v668
        %686 = vmatprep.subr.bf16.mxu0 0
        %687 = vmatpush1.bf16.msra.mxu0 %v670
        %688 = vmatprep.subr.bf16.mxu0 0
        %689 = vmatpush1.bf16.msra.mxu0 %v671
        %690 = vmatprep.subr.bf16.mxu0 0
        %691 = vmatpush1.bf16.msra.mxu0 %v672
        %692 = vmatprep.subr.bf16.mxu0 0
        %693 = vmatpush1.bf16.msra.mxu0 %v673
        %694 = vmatprep.subr.bf16.mxu0 0
        %695 = vmatpush1.bf16.msra.mxu0 %v674
        %696 = vmatprep.subr.bf16.mxu0 0
        %697 = vmatpush1.bf16.msra.mxu0 %v675
        %698 = vmatprep.subr.bf16.mxu0 0
        %699 = vmatpush1.bf16.msra.mxu0 %v676
        %700 = vmatprep.subr.bf16.mxu0 0
        %701 = vmatpush1.bf16.msra.mxu0 %v677
        %702 = vmatprep.subr.bf16.mxu0 0
        %703 = vmatpush1.bf16.msra.mxu0 0
        %704 = vmatprep.subr.bf16.mxu0 0
        %705 = vmatpush1.bf16.msra.mxu0 0
        %706 = vmatprep.subr.bf16.mxu0 0
        %707 = vmatpush1.bf16.msra.mxu0 0
        %708 = vmatprep.subr.bf16.mxu0 0
        %709 = vmatpush1.bf16.msra.mxu0 0
        %710 = vmatprep.subr.bf16.mxu0 0
        %711 = vmatpush1.bf16.msra.mxu0 0
        %712 = vmatprep.subr.bf16.mxu0 0
        %713 = vmatpush1.bf16.msra.mxu0 0
        %714 = vmatprep.subr.bf16.mxu0 0
        %715 = vmatpush1.bf16.msra.mxu0 0
        %716 = vmatprep.subr.bf16.mxu0 0
        %717 = vmatpush1.bf16.msra.mxu0 0
        %718 = vmatprep.mubr.bf16.mxu0 0
        %719 = vmatmul.mubr.bf16.gmra.mrb[0].mxu0 %v615
        %v720 = vpop.f32.mrb[0].mxu0
        %v721 = vadd.f32 %v636, %v720
        %v722 = vpop.f32.mrb[0].mxu0
        %v723 = vpop.f32.mrb[0].mxu0
        %v724 = vpop.f32.mrb[0].mxu0
        %725 = vdwg.mxu0
        %v726 = vmax.f32 %v721, 0.0
        %v727 = vpack.c.bf16 %v726, %v726
        %v728 = vld [vmem:[#allocation10] sm:$0xf]
        %v729 = vld [vmem:[#allocation10 + $0x4] sm:$0xf]
        %v730 = vld [vmem:[#allocation10 + $0x8] sm:$0xf]
        %v731 = vld [vmem:[#allocation10 + $0xc] sm:$0xf]
        %v732 = vld [vmem:[#allocation10 + $0x10] sm:$0xf]
        %v733 = vld [vmem:[#allocation10 + $0x14] sm:$0xf]
        %v734 = vld [vmem:[#allocation10 + $0x18] sm:$0xf]
        %v735 = vld [vmem:[#allocation10 + $0x1c] sm:$0xf]
        %v736 = vld [vmem:[#allocation10 + $0x20] sm:$0xf]
        %v737 = vld [vmem:[#allocation10 + $0x24] sm:$0xf]
        %v738 = vld [vmem:[#allocation10 + $0x28] sm:$0xf]
        %v739 = vld [vmem:[#allocation10 + $0x2c] sm:$0xf]
        %v740 = vld [vmem:[#allocation10 + $0x30] sm:$0xf]
        %v741 = vld [vmem:[#allocation10 + $0x34] sm:$0xf]
        %v742 = vld [vmem:[#allocation10 + $0x38] sm:$0xf]
        %v743 = vld [vmem:[#allocation10 + $0x3c] sm:$0xf]
        %v745 = vlaneseq
        %v746 = vshrl.u32 %v745, 7
        %v747 = vsub.s32 0, %v746
        %v748 = vrot.slane %v329, %v747
        %v766 = vunpack.c.l.b16 %v728
        %v767 = vunpack.c.l.b16 %v729
        %v768 = vunpack.c.l.b16 %v730
        %v769 = vunpack.c.l.b16 %v731
        %v770 = vunpack.c.l.b16 %v732
        %v771 = vunpack.c.l.b16 %v733
        %v772 = vunpack.c.l.b16 %v734
        %v773 = vunpack.c.l.b16 %v735
        %v774 = vunpack.c.l.b16 %v736
        %v775 = vunpack.c.l.b16 %v737
        %v776 = vunpack.c.l.b16 %v738
        %v777 = vunpack.c.l.b16 %v739
        %v778 = vunpack.c.l.b16 %v740
        %v779 = vunpack.c.l.b16 %v741
        %v780 = vunpack.c.l.b16 %v742
        %v781 = vunpack.c.l.b16 %v743
        %v782 = vpack.c.b16 %v767, %v766
        %v783 = vpack.c.b16 %v769, %v768
        %v784 = vpack.c.b16 %v771, %v770
        %v785 = vpack.c.b16 %v773, %v772
        %v786 = vpack.c.b16 %v775, %v774
        %v787 = vpack.c.b16 %v777, %v776
        %v788 = vpack.c.b16 %v779, %v778
        %v789 = vpack.c.b16 %v781, %v780
        %798 = vmatprep.subr.bf16.mxu0 0
        %799 = vmatpush1.bf16.msra.mxu0 %v782
        %800 = vmatprep.subr.bf16.mxu0 0
        %801 = vmatpush1.bf16.msra.mxu0 %v783
        %802 = vmatprep.subr.bf16.mxu0 0
        %803 = vmatpush1.bf16.msra.mxu0 %v784
        %804 = vmatprep.subr.bf16.mxu0 0
        %805 = vmatpush1.bf16.msra.mxu0 %v785
        %806 = vmatprep.subr.bf16.mxu0 0
        %807 = vmatpush1.bf16.msra.mxu0 %v786
        %808 = vmatprep.subr.bf16.mxu0 0
        %809 = vmatpush1.bf16.msra.mxu0 %v787
        %810 = vmatprep.subr.bf16.mxu0 0
        %811 = vmatpush1.bf16.msra.mxu0 %v788
        %812 = vmatprep.subr.bf16.mxu0 0
        %813 = vmatpush1.bf16.msra.mxu0 %v789
        %814 = vmatprep.subr.bf16.mxu0 0
        %815 = vmatpush1.bf16.msra.mxu0 0
        %816 = vmatprep.subr.bf16.mxu0 0
        %817 = vmatpush1.bf16.msra.mxu0 0
        %818 = vmatprep.subr.bf16.mxu0 0
        %819 = vmatpush1.bf16.msra.mxu0 0
        %820 = vmatprep.subr.bf16.mxu0 0
        %821 = vmatpush1.bf16.msra.mxu0 0
        %822 = vmatprep.subr.bf16.mxu0 0
        %823 = vmatpush1.bf16.msra.mxu0 0
        %824 = vmatprep.subr.bf16.mxu0 0
        %825 = vmatpush1.bf16.msra.mxu0 0
        %826 = vmatprep.subr.bf16.mxu0 0
        %827 = vmatpush1.bf16.msra.mxu0 0
        %828 = vmatprep.subr.bf16.mxu0 0
        %829 = vmatpush1.bf16.msra.mxu0 0
        %830 = vmatprep.mubr.bf16.mxu0 0
        %831 = vmatmul.mubr.bf16.gmra.mrb[0].mxu0 %v727
        %v832 = vpop.f32.mrb[0].mxu0
        %v833 = vadd.f32 %v748, %v832
        %v834 = vpop.f32.mrb[0].mxu0
        %v835 = vpop.f32.mrb[0].mxu0
        %v836 = vpop.f32.mrb[0].mxu0
        %837 = vdwg.mxu0
        %v838 = vpack.c.bf16 %v833, %v833
        %839 = vst [vmem:[%s324] sm:$0xf] %v838
        %s840 = sand.u32 %s164, 1
        %s841 = scalar_lea.sflag [#allocation4], %s840
        %s842 = sand.u32 %s164, 1
        %s843 = smul.addr %s842, 4
        %s844 = scalar_lea.vmem [#allocation11], %s843
        // Predicated region
        $region65: #{tpu_custom_call.1} parent=43 // pred_check
          %p845 = pneg %p174
        $region66: #{tpu_custom_call.1} parent=43 // pred_check_branch
          %847 = sbr.rel (%p845) target = $region68
        $region67: #{tpu_custom_call.1} parent=43 // pred_region
          %s849 = ssub.s32 64, 64
          %850 = vsyncadd %s841, %s849
          %s851 = smul.addr %s25, 64
          %s852 = scalar_lea.hbm %s6, %s851
          %s854 = sshll.u32 %s844, 4
          %s855 = int_to_ptr.vmem [resolvable:$true] %s854
          %857 = dma.vmem_to_hbm [thread:$0]  %s855, 64, %s852, %s841
        $region68: #{tpu_custom_call.1} parent=43 // pred_fallthru
          _
      $region44: #{tpu_custom_call.1} parent=5 // pred_fallthru
        _
      %p858 = scmp.le.s32.totalorder 2, %s20
      // Predicated region
      $region69: #{tpu_custom_call.1} parent=5 // pred_check
        %p859 = pneg %p858
      $region70: #{tpu_custom_call.1} parent=5 // pred_check_branch
        %861 = sbr.rel (%p859) target = $region72
      $region71: #{tpu_custom_call.1} parent=5 // pred_region
        %s862 = ssub.s32 %s20, 2
        // Predicated region
        $region73: #{tpu_custom_call.1} parent=71 // pred_check
          %p863 = pneg %p180
        $region74: #{tpu_custom_call.1} parent=71 // pred_check_branch
          %865 = sbr.rel (%p863) target = $region76
        $region75: #{tpu_custom_call.1} parent=71 // pred_region
          %s866 = sand.u32 %s165, 1
          %s867 = scalar_lea.sflag [#allocation4], %s866
          %s868 = sand.u32 %s165, 1
          %s869 = smul.addr %s868, 4
          %s870 = scalar_lea.vmem [#allocation11], %s869
          %871 = dma.done %s867, 64
        $region76: #{tpu_custom_call.1} parent=71 // pred_fallthru
          _
      $region72: #{tpu_custom_call.1} parent=5 // pred_fallthru
        _
    $region6: #{tpu_custom_call.1} parent=1 // loop_footer
      %s24 = sadd.s32 1, %s20
    $region7: #{tpu_custom_call.1} parent=1 // loop_footer_branch
      %19 = sbr.rel target = $region3
    $region8: #{tpu_custom_call.1} parent=1 // loop_exit
      _
    %872 = vsyncpa [#allocation3], 1
    %s873 = scalar_lea.sflag [#allocation3], 1
    %874 = vsyncpa %s873, 1
    %875 = vsyncpa [#allocation6], 1
    %876 = vsyncpa [#allocation9], 1
    %877 = vsyncpa [#allocation4], 1
    %s878 = scalar_lea.sflag [#allocation4], 1
    %879 = vsyncpa %s878, 1

// kernel: tpu_custom_call.1
$region0: #{tpu_custom_call.1}
  #allocation0 [shape = 'u32[]', space=smem, size = 0x4, offset = 0x4, fixed_abs, tag = 'smem constant byte address 0x4 - core index']
  #allocation1 [shape = 'u32[144,128]{1,0:T(1,128)}', space=vmem, size = 0x12000, scoped, tag = 'internal scratch']
  %s0 = inlined_call_operand.hbm [shape: f32[16,64], index: 0, kind: input, shape index: {}]
  %s1 = inlined_call_operand.hbm [shape: bf16[64,256], index: 1, kind: input, shape index: {}]
  %s2 = inlined_call_operand.hbm [shape: bf16[256,128], index: 2, kind: input, shape index: {}]
  %s3 = inlined_call_operand.hbm [shape: bf16[128,128], index: 3, kind: input, shape index: {}]
  %s4 = inlined_call_operand.hbm [shape: bf16[128,128], index: 4, kind: input, shape index: {}]
  %s5 = inlined_call_operand.vmem [shape: f32[1,640], index: 5, kind: input, shape index: {}]
  %s6 = inlined_call_operand.hbm [shape: bf16[16,128], index: 6, kind: output, shape index: {}]
  %s7 = sld [smem:[#allocation0]]
  $region77: #{tpu_custom_call.1} parent=0
    _
  %s9 = ssub.s32 1, %s7
  %s10 = scalar_select 0, %s9, %s7
  $region1: #{tpu_custom_call.1} parent=0
    #allocation2 [shape = 'u8[8192]{0}', space=vmem, size = 0x2000, scoped, tag = 'input window, operand 0']
    #allocation3 [shape = 's32[2]{0}', space=sflag, size = 0x8, scoped, tag = 'scoped memory for tpu_custom_call.1']
    #allocation4 [shape = 's32[2]{0}', space=sflag, size = 0x8, scoped, tag = 'scoped memory for tpu_custom_call.1']
    #allocation5 [shape = 'u8[32768]{0}', space=vmem, size = 0x8000, scoped, tag = 'input window, operand 1, single buffered']
    #allocation6 [shape = 's32[1]{0}', space=sflag, size = 0x4, scoped, tag = 'scoped memory for tpu_custom_call.1']
    #allocation7 [shape = 'u8[65536]{0}', space=vmem, size = 0x10000, scoped, tag = 'input window, operand 2, single buffered']
    #allocation8 [shape = 'u8[32768]{0}', space=vmem, size = 0x8000, scoped, tag = 'input window, operand 3, single buffered']
    #allocation9 [shape = 's32[1]{0}', space=sflag, size = 0x4, scoped, tag = 'scoped memory for tpu_custom_call.1']
    #allocation10 [shape = 'u8[32768]{0}', space=vmem, size = 0x8000, scoped, tag = 'input window, operand 4, single buffered']
    #allocation11 [shape = 'u8[4096]{0}', space=vmem, size = 0x1000, scoped, tag = 'output window, operand 0']
    %11 = vsyncpa [#allocation3], 0
    %s12 = scalar_lea.sflag [#allocation3], 1
    %13 = vsyncpa %s12, 0
    %14 = vsyncpa [#allocation6], 0
    %15 = vsyncpa [#allocation9], 0
    %16 = vsyncpa [#allocation4], 0
    %s17 = scalar_lea.sflag [#allocation4], 1
    %18 = vsyncpa %s17, 0
    loop: start=0, step=1, limit=4
    $region2: #{tpu_custom_call.1} parent=1 // loop_pre_header
      _
    $region3: #{tpu_custom_call.1} parent=1 // loop_header
      %s20 = sphi 0, %s24
      %p21 = scmp.ge.s32.totalorder %s20, 4
      %s30 = sphi 0, %s32
      %s33 = sphi 0, %s30
      %s34 = sphi 0, %s33
      %s50 = sphi 0, %s34
      %s54 = sphi 0, %s54
      %s56 = sphi 0, %s54
      %s57 = sphi 0, %s56
      %s71 = sphi 0, %s57
      %s75 = sphi 0, %s75
      %s77 = sphi 0, %s75
      %s78 = sphi 0, %s77
      %s92 = sphi 0, %s78
      %s96 = sphi 0, %s96
      %s98 = sphi 0, %s96
      %s99 = sphi 0, %s98
      %s113 = sphi 0, %s99
      %s117 = sphi 0, %s117
      %s119 = sphi 0, %s117
      %s120 = sphi 0, %s119
      %s134 = sphi 0, %s120
      %s138 = sphi 0, %s138
      %s140 = sphi 0, %s138
      %s141 = sphi 0, %s140
      %s155 = sphi 0, %s141
      %s161 = sphi 0, %s163
      %s164 = sphi 0, %s161
      %s165 = sphi 0, %s164
      %s181 = sphi 0, %s165
    $region4: #{tpu_custom_call.1} parent=1 // loop_header_branch
      %23 = sbr.rel (%p21) target = $region8
    $region5: #{tpu_custom_call.1} parent=1 // loop_body
      %s25 = ssub.s32 %s20, 1
      %s26 = ssub.s32 %s20, 2
      %s27 = sadd.s32 %s20, 1
      %s28 = ssub.s32 %s20, %s27
      %p29 = scmp.eq.s32.totalorder %s28, 0
      %s31 = sadd.s32 %s30, 1
      %s32 = scalar_select %p29, %s30, %s31
      %p35 = pneg %p29
      %p36 = scmp.eq.s32.totalorder %s20, 1
      %p37 = por %p35, %p36
      %p38 = scmp.ne.s32.totalorder %s30, %s33
      %p39 = scmp.eq.s32.totalorder %s20, 0
      %p40 = por %p38, %p39
      %p41 = scmp.ne.s32.totalorder %s30, %s33
      %p42 = scmp.eq.s32.totalorder %s25, 1
      %p43 = por %p41, %p42
      %p44 = scmp.ne.s32.totalorder %s33, %s34
      %p45 = scmp.eq.s32.totalorder %s25, 0
      %p46 = por %p44, %p45
      %p47 = scmp.ne.s32.totalorder %s33, %s34
      %p48 = scmp.eq.s32.totalorder %s26, 1
      %p49 = por %p47, %p48
      %p51 = scmp.ne.s32.totalorder %s34, %s50
      %p52 = scmp.eq.s32.totalorder %s26, 0
      %p53 = por %p51, %p52
      %s55 = sadd.s32 %s54, 1
      %p58 = scmp.eq.s32.totalorder %s20, 1
      %p59 = scmp.ne.s32.totalorder %s54, %s56
      %p60 = scmp.eq.s32.totalorder %s20, 0
      %p61 = por %p59, %p60
      %p62 = scmp.ne.s32.totalorder %s54, %s56
      %p63 = scmp.eq.s32.totalorder %s25, 1
      %p64 = por %p62, %p63
      %p65 = scmp.ne.s32.totalorder %s56, %s57
      %p66 = scmp.eq.s32.totalorder %s25, 0
      %p67 = por %p65, %p66
      %p68 = scmp.ne.s32.totalorder %s56, %s57
      %p69 = scmp.eq.s32.totalorder %s26, 1
      %p70 = por %p68, %p69
      %p72 = scmp.ne.s32.totalorder %s57, %s71
      %p73 = scmp.eq.s32.totalorder %s26, 0
      %p74 = por %p72, %p73
      %s76 = sadd.s32 %s75, 1
      %p79 = scmp.eq.s32.totalorder %s20, 1
      %p80 = scmp.ne.s32.totalorder %s75, %s77
      %p81 = scmp.eq.s32.totalorder %s20, 0
      %p82 = por %p80, %p81
      %p83 = scmp.ne.s32.totalorder %s75, %s77
      %p84 = scmp.eq.s32.totalorder %s25, 1
      %p85 = por %p83, %p84
      %p86 = scmp.ne.s32.totalorder %s77, %s78
      %p87 = scmp.eq.s32.totalorder %s25, 0
      %p88 = por %p86, %p87
      %p89 = scmp.ne.s32.totalorder %s77, %s78
      %p90 = scmp.eq.s32.totalorder %s26, 1
      %p91 = por %p89, %p90
      %p93 = scmp.ne.s32.totalorder %s78, %s92
      %p94 = scmp.eq.s32.totalorder %s26, 0
      %p95 = por %p93, %p94
      %s97 = sadd.s32 %s96, 1
      %p100 = scmp.eq.s32.totalorder %s20, 1
      %p101 = scmp.ne.s32.totalorder %s96, %s98
      %p102 = scmp.eq.s32.totalorder %s20, 0
      %p103 = por %p101, %p102
      %p104 = scmp.ne.s32.totalorder %s96, %s98
      %p105 = scmp.eq.s32.totalorder %s25, 1
      %p106 = por %p104, %p105
      %p107 = scmp.ne.s32.totalorder %s98, %s99
      %p108 = scmp.eq.s32.totalorder %s25, 0
      %p109 = por %p107, %p108
      %p110 = scmp.ne.s32.totalorder %s98, %s99
      %p111 = scmp.eq.s32.totalorder %s26, 1
      %p112 = por %p110, %p111
      %p114 = scmp.ne.s32.totalorder %s99, %s113
      %p115 = scmp.eq.s32.totalorder %s26, 0
      %p116 = por %p114, %p115
      %s118 = sadd.s32 %s117, 1
      %p121 = scmp.eq.s32.totalorder %s20, 1
      %p122 = scmp.ne.s32.totalorder %s117, %s119
      %p123 = scmp.eq.s32.totalorder %s20, 0
      %p124 = por %p122, %p123
      %p125 = scmp.ne.s32.totalorder %s117, %s119
      %p126 = scmp.eq.s32.totalorder %s25, 1
      %p127 = por %p125, %p126
      %p128 = scmp.ne.s32.totalorder %s119, %s120
      %p129 = scmp.eq.s32.totalorder %s25, 0
      %p130 = por %p128, %p129
      %p131 = scmp.ne.s32.totalorder %s119, %s120
      %p132 = scmp.eq.s32.totalorder %s26, 1
      %p133 = por %p131, %p132
      %p135 = scmp.ne.s32.totalorder %s120, %s134
      %p136 = scmp.eq.s32.totalorder %s26, 0
      %p137 = por %p135, %p136
      %s139 = sadd.s32 %s138, 1
      %p142 = scmp.eq.s32.totalorder %s20, 1
      %p143 = scmp.ne.s32.totalorder %s138, %s140
      %p144 = scmp.eq.s32.totalorder %s20, 0
      %p145 = por %p143, %p144
      %p146 = scmp.ne.s32.totalorder %s138, %s140
      %p147 = scmp.eq.s32.totalorder %s25, 1
      %p148 = por %p146, %p147
      %p149 = scmp.ne.s32.totalorder %s140, %s141
      %p150 = scmp.eq.s32.totalorder %s25, 0
      %p151 = por %p149, %p150
      %p152 = scmp.ne.s32.totalorder %s140, %s141
      %p153 = scmp.eq.s32.totalorder %s26, 1
      %p154 = por %p152, %p153
      %p156 = scmp.ne.s32.totalorder %s141, %s155
      %p157 = scmp.eq.s32.totalorder %s26, 0
      %p158 = por %p156, %p157
      %s159 = ssub.s32 %s20, %s27
      %p160 = scmp.eq.s32.totalorder %s159, 0
      %s162 = sadd.s32 %s161, 1
      %s163 = scalar_select %p160, %s161, %s162
      %p166 = pneg %p160
      %p167 = scmp.eq.s32.totalorder %s20, 1
      %p168 = por %p166, %p167
      %p169 = scmp.ne.s32.totalorder %s161, %s164
      %p170 = scmp.eq.s32.totalorder %s20, 0
      %p171 = por %p169, %p170
      %p172 = scmp.ne.s32.totalorder %s161, %s164
      %p173 = scmp.eq.s32.totalorder %s25, 1
      %p174 = por %p172, %p173
      %p175 = scmp.ne.s32.totalorder %s164, %s165
      %p176 = scmp.eq.s32.totalorder %s25, 0
      %p177 = por %p175, %p176
      %p178 = scmp.ne.s32.totalorder %s164, %s165
      %p179 = scmp.eq.s32.totalorder %s26, 1
      %p180 = por %p178, %p179
      %p182 = scmp.ne.s32.totalorder %s165, %s181
      %p183 = scmp.eq.s32.totalorder %s26, 0
      %p184 = por %p182, %p183
      %p185 = scmp.le.s32.totalorder 1, %s20
      %p186 = scmp.lt.s32.totalorder %s20, 3
      %p187 = pnand %p185, %p186
      %p188 = pneg %p187
      // Predicated region
      $region9: #{tpu_custom_call.1} parent=5 // pred_check
        _
      $region10: #{tpu_custom_call.1} parent=5 // pred_check_branch
        %190 = sbr.rel (%p187) target = $region12
      $region11: #{tpu_custom_call.1} parent=5 // pred_region
        %s191 = ssub.s32 %s20, 1
        // Predicated region
        $region13: #{tpu_custom_call.1} parent=11 // pred_check
          %p192 = pneg %p67
        $region14: #{tpu_custom_call.1} parent=11 // pred_check_branch
          %194 = sbr.rel (%p192) target = $region16
        $region15: #{tpu_custom_call.1} parent=11 // pred_region
          %s196 = ssub.s32 1024, 1024
          %197 = vsyncadd [#allocation6], %s196
          %s198 = sshll.u32 [#allocation5], 4
          %s199 = int_to_ptr.vmem [resolvable:$true] %s198
          %204 = dma.hbm_to_vmem [thread:$0]  %s1, 1024, %s199, [#allocation6], 128, 128, 8
        $region16: #{tpu_custom_call.1} parent=11 // pred_fallthru
          _
        // Predicated region
        $region17: #{tpu_custom_call.1} parent=11 // pred_check
          %p205 = pneg %p88
        $region18: #{tpu_custom_call.1} parent=11 // pred_check_branch
          %207 = sbr.rel (%p205) target = $region20
        $region19: #{tpu_custom_call.1} parent=11 // pred_region
          %s209 = ssub.s32 2048, 2048
          %210 = vsyncadd [#allocation6], %s209
          %s211 = sshll.u32 [#allocation7], 4
          %s212 = int_to_ptr.vmem [resolvable:$true] %s211
          %217 = dma.hbm_to_vmem [thread:$0]  %s2, 2048, %s212, [#allocation6], 64, 64, 4
        $region20: #{tpu_custom_call.1} parent=11 // pred_fallthru
          _
        // Predicated region
        $region21: #{tpu_custom_call.1} parent=11 // pred_check
          %p218 = pneg %p109
        $region22: #{tpu_custom_call.1} parent=11 // pred_check_branch
          %220 = sbr.rel (%p218) target = $region24
        $region23: #{tpu_custom_call.1} parent=11 // pred_region
          %s222 = ssub.s32 1024, 1024
          %223 = vsyncadd [#allocation9], %s222
          %s224 = sshll.u32 [#allocation8], 4
          %s225 = int_to_ptr.vmem [resolvable:$true] %s224
          %230 = dma.hbm_to_vmem [thread:$0]  %s3, 1024, %s225, [#allocation9], 64, 64, 4
        $region24: #{tpu_custom_call.1} parent=11 // pred_fallthru
          _
        // Predicated region
        $region25: #{tpu_custom_call.1} parent=11 // pred_check
          %p231 = pneg %p130
        $region26: #{tpu_custom_call.1} parent=11 // pred_check_branch
          %233 = sbr.rel (%p231) target = $region28
        $region27: #{tpu_custom_call.1} parent=11 // pred_region
          %s235 = ssub.s32 1024, 1024
          %236 = vsyncadd [#allocation9], %s235
          %s237 = sshll.u32 [#allocation10], 4
          %s238 = int_to_ptr.vmem [resolvable:$true] %s237
          %243 = dma.hbm_to_vmem [thread:$0]  %s4, 1024, %s238, [#allocation9], 64, 64, 4
        $region28: #{tpu_custom_call.1} parent=11 // pred_fallthru
          _
        // Predicated region
        $region29: #{tpu_custom_call.1} parent=11 // pred_check
          %p244 = pneg %p151
        $region30: #{tpu_custom_call.1} parent=11 // pred_check_branch
          %246 = sbr.rel (%p244) target = $region32
        $region31: #{tpu_custom_call.1} parent=11 // pred_region
          _
        $region32: #{tpu_custom_call.1} parent=11 // pred_fallthru
          _
      $region12: #{tpu_custom_call.1} parent=5 // pred_fallthru
        _
      %p247 = scmp.lt.s32.totalorder %s20, 2
      // Predicated region
      $region33: #{tpu_custom_call.1} parent=5 // pred_check
        %p248 = pneg %p247
      $region34: #{tpu_custom_call.1} parent=5 // pred_check_branch
        %250 = sbr.rel (%p248) target = $region36
      $region35: #{tpu_custom_call.1} parent=5 // pred_region
        // Predicated region
        $region37: #{tpu_custom_call.1} parent=35 // pred_check
          %p251 = pneg %p40
        $region38: #{tpu_custom_call.1} parent=35 // pred_check_branch
          %253 = sbr.rel (%p251) target = $region40
        $region39: #{tpu_custom_call.1} parent=35 // pred_region
          %s254 = sand.u32 %s30, 1
          %s255 = scalar_lea.sflag [#allocation3], %s254
          %s256 = sand.u32 %s30, 1
          %s257 = smul.addr %s256, 8
          %s258 = scalar_lea.vmem [#allocation2], %s257
          %s260 = ssub.s32 128, 128
          %261 = vsyncadd %s255, %s260
          %s262 = smul.addr %s20, 128
          %s263 = scalar_lea.hbm %s0, %s262
          %s265 = sshll.u32 %s258, 4
          %s266 = int_to_ptr.vmem [resolvable:$true] %s265
          %268 = dma.hbm_to_vmem [thread:$0]  %s263, 128, %s266, %s255
        $region40: #{tpu_custom_call.1} parent=35 // pred_fallthru
          _
      $region36: #{tpu_custom_call.1} parent=5 // pred_fallthru
        _
      %p269 = scmp.le.s32.totalorder 1, %s20
      %p270 = scmp.lt.s32.totalorder %s20, 3
      %p271 = pnand %p269, %p270
      %p272 = pneg %p271
      // Predicated region
      $region41: #{tpu_custom_call.1} parent=5 // pred_check
        _
      $region42: #{tpu_custom_call.1} parent=5 // pred_check_branch
        %274 = sbr.rel (%p271) target = $region44
      $region43: #{tpu_custom_call.1} parent=5 // pred_region
        %s275 = ssub.s32 %s20, 1
        %s276 = sand.u32 %s33, 1
        %s277 = scalar_lea.sflag [#allocation3], %s276
        %s278 = sand.u32 %s33, 1
        %s279 = smul.addr %s278, 8
        %s280 = scalar_lea.vmem [#allocation2], %s279
        // Predicated region
        $region45: #{tpu_custom_call.1} parent=43 // pred_check
          %p281 = pneg %p46
        $region46: #{tpu_custom_call.1} parent=43 // pred_check_branch
          %283 = sbr.rel (%p281) target = $region48
        $region47: #{tpu_custom_call.1} parent=43 // pred_region
          %284 = dma.done %s277, 128
        $region48: #{tpu_custom_call.1} parent=43 // pred_fallthru
          _
        // Predicated region
        $region49: #{tpu_custom_call.1} parent=43 // pred_check
          %p285 = pneg %p67
        $region50: #{tpu_custom_call.1} parent=43 // pred_check_branch
          %287 = sbr.rel (%p285) target = $region52
        $region51: #{tpu_custom_call.1} parent=43 // pred_region
          %288 = dma.done [#allocation6], 1024
        $region52: #{tpu_custom_call.1} parent=43 // pred_fallthru
          _
        // Predicated region
        $region53: #{tpu_custom_call.1} parent=43 // pred_check
          %p289 = pneg %p88
        $region54: #{tpu_custom_call.1} parent=43 // pred_check_branch
          %291 = sbr.rel (%p289) target = $region56
        $region55: #{tpu_custom_call.1} parent=43 // pred_region
          %292 = dma.done [#allocation6], 2048
        $region56: #{tpu_custom_call.1} parent=43 // pred_fallthru
          _
        // Predicated region
        $region57: #{tpu_custom_call.1} parent=43 // pred_check
          %p293 = pneg %p109
        $region58: #{tpu_custom_call.1} parent=43 // pred_check_branch
          %295 = sbr.rel (%p293) target = $region60
        $region59: #{tpu_custom_call.1} parent=43 // pred_region
          %296 = dma.done [#allocation9], 1024
        $region60: #{tpu_custom_call.1} parent=43 // pred_fallthru
          _
        // Predicated region
        $region61: #{tpu_custom_call.1} parent=43 // pred_check
          %p297 = pneg %p130
        $region62: #{tpu_custom_call.1} parent=43 // pred_check_branch
          %299 = sbr.rel (%p297) target = $region64
        $region63: #{tpu_custom_call.1} parent=43 // pred_region
          %300 = dma.done [#allocation9], 1024
        $region64: #{tpu_custom_call.1} parent=43 // pred_fallthru
          _
        %s301 = sand.u32 %s33, 1
        %s302 = scalar_lea.sflag [#allocation3], %s301
        %s303 = sand.u32 %s33, 1
        %s304 = smul.addr %s303, 8
        %s305 = scalar_lea.vmem [#allocation2], %s304
        %p306 = pneg %p46
        %p307 = pneg %p43
        %p308 = pneg %p67
        %p309 = pneg %p64
        %p310 = pneg %p88
        %p311 = pneg %p85
        %p312 = pneg %p109
        %p313 = pneg %p106
        %p314 = pneg %p130
        %p315 = pneg %p127
        %p316 = pneg %p151
        %p317 = pneg %p148
        %p318 = pneg %p177
        %p319 = pneg %p174
        %s320 = sand.u32 %s164, 1
        %s321 = scalar_lea.sflag [#allocation4], %s320
        %s322 = sand.u32 %s164, 1
        %s323 = smul.addr %s322, 4
        %s324 = scalar_lea.vmem [#allocation11], %s323
        %v326 = vld [vmem:[%s5] sm:$0x3]
        %v327 = vld [vmem:[%s5 + $0x2] sm:$0x1]
        %v328 = vld [vmem:[%s5 + $0x3] sm:$0x1]
        %v329 = vld [vmem:[%s5 + $0x4] sm:$0x1]
        %v330 = vld [vmem:[%s280] sm:$0xff]
        %v331 = vpack.c.bf16 %v330, %v330
        %v332 = vld [vmem:[#allocation5] sm:$0xff]
        %v333 = vld [vmem:[#allocation5 + $0x8] sm:$0xff]
        %v334 = vld [vmem:[#allocation5 + $0x10] sm:$0xff]
        %v335 = vld [vmem:[#allocation5 + $0x18] sm:$0xff]
        %v336 = vld [vmem:[#allocation5 + $0x20] sm:$0xff]
        %v337 = vld [vmem:[#allocation5 + $0x28] sm:$0xff]
        %v338 = vld [vmem:[#allocation5 + $0x30] sm:$0xff]
        %v339 = vld [vmem:[#allocation5 + $0x38] sm:$0xff]
        %v341 = vlaneseq
        %v342 = vshrl.u32 %v341, 7
        %v343 = vsub.s32 0, %v342
        %v344 = vrot.slane %v326, %v343
        %v345 = vlaneseq
        %v346 = vshrl.u32 %v345, 7
        %v347 = vsub.s32 1, %v346
        %v348 = vrot.slane %v326, %v347
        %v359 = vunpack.c.l.b16 %v332
        %v360 = vunpack.c.h.b16 %v332
        %v361 = vunpack.c.l.b16 %v333
        %v362 = vunpack.c.h.b16 %v333
        %v363 = vunpack.c.l.b16 %v334
        %v364 = vunpack.c.h.b16 %v334
        %v365 = vunpack.c.l.b16 %v335
        %v366 = vunpack.c.h.b16 %v335
        %v367 = vunpack.c.l.b16 %v336
        %v368 = vunpack.c.h.b16 %v336
        %v369 = vunpack.c.l.b16 %v337
        %v370 = vunpack.c.h.b16 %v337
        %v371 = vunpack.c.l.b16 %v338
        %v372 = vunpack.c.h.b16 %v338
        %v373 = vunpack.c.l.b16 %v339
        %v374 = vunpack.c.h.b16 %v339
        %v375 = vpack.c.b16 %v361, %v359
        %v376 = vpack.c.b16 %v362, %v360
        %v377 = vpack.c.b16 %v365, %v363
        %v378 = vpack.c.b16 %v366, %v364
        %v379 = vpack.c.b16 %v369, %v367
        %v380 = vpack.c.b16 %v370, %v368
        %v381 = vpack.c.b16 %v373, %v371
        %v382 = vpack.c.b16 %v374, %v372
        %vm391 = vcmask 523264
        %v393 = vsel %vm391, %v331, 0
        %395 = vmatprep.subr.bf16.mxu0 %v376
        %396 = vmatpush1.bf16.msra.mxu0 %v375
        %397 = vmatprep.subr.bf16.mxu0 %v378
        %398 = vmatpush1.bf16.msra.mxu0 %v377
        %399 = vmatprep.subr.bf16.mxu0 %v380
        %400 = vmatpush1.bf16.msra.mxu0 %v379
        %401 = vmatprep.subr.bf16.mxu0 %v382
        %402 = vmatpush1.bf16.msra.mxu0 %v381
        %403 = vmatprep.subr.bf16.mxu0 0
        %404 = vmatpush1.bf16.msra.mxu0 0
        %405 = vmatprep.subr.bf16.mxu0 0
        %406 = vmatpush1.bf16.msra.mxu0 0
        %407 = vmatprep.subr.bf16.mxu0 0
        %408 = vmatpush1.bf16.msra.mxu0 0
        %409 = vmatprep.subr.bf16.mxu0 0
        %410 = vmatpush1.bf16.msra.mxu0 0
        %411 = vmatprep.subr.bf16.mxu0 0
        %412 = vmatpush1.bf16.msra.mxu0 0
        %413 = vmatprep.subr.bf16.mxu0 0
        %414 = vmatpush1.bf16.msra.mxu0 0
        %415 = vmatprep.subr.bf16.mxu0 0
        %416 = vmatpush1.bf16.msra.mxu0 0
        %417 = vmatprep.subr.bf16.mxu0 0
        %418 = vmatpush1.bf16.msra.mxu0 0
        %419 = vmatprep.subr.bf16.mxu0 0
        %420 = vmatpush1.bf16.msra.mxu0 0
        %421 = vmatprep.subr.bf16.mxu0 0
        %422 = vmatpush1.bf16.msra.mxu0 0
        %423 = vmatprep.subr.bf16.mxu0 0
        %424 = vmatpush1.bf16.msra.mxu0 0
        %425 = vmatprep.subr.bf16.mxu0 0
        %426 = vmatpush1.bf16.msra.mxu0 0
        %427 = vmatprep.mubr.bf16.mxu0 0
        %428 = vmatmul.mubr.bf16.gmra.mrb[0].mxu0 %v393
        %v429 = vpop.f32.mrb[0].mxu0
        %v430 = vadd.f32 %v344, %v429
        %v431 = vpop.f32.mrb[0].mxu0
        %v432 = vadd.f32 %v348, %v431
        %v433 = vpop.f32.mrb[0].mxu0
        %v434 = vpop.f32.mrb[0].mxu0
        %435 = vdwg.mxu0
        %v436 = vmax.f32 %v430, 0.0
        %v437 = vmax.f32 %v432, 0.0
        %v438 = vpack.c.bf16 %v436, %v436
        %v439 = vpack.c.bf16 %v437, %v437
        %v440 = vld [vmem:[#allocation7] sm:$0xf]
        %v441 = vld [vmem:[#allocation7 + $0x4] sm:$0xf]
        %v442 = vld [vmem:[#allocation7 + $0x8] sm:$0xf]
        %v443 = vld [vmem:[#allocation7 + $0xc] sm:$0xf]
        %v444 = vld [vmem:[#allocation7 + $0x10] sm:$0xf]
        %v445 = vld [vmem:[#allocation7 + $0x14] sm:$0xf]
        %v446 = vld [vmem:[#allocation7 + $0x18] sm:$0xf]
        %v447 = vld [vmem:[#allocation7 + $0x1c] sm:$0xf]
        %v448 = vld [vmem:[#allocation7 + $0x20] sm:$0xf]
        %v449 = vld [vmem:[#allocation7 + $0x24] sm:$0xf]
        %v450 = vld [vmem:[#allocation7 + $0x28] sm:$0xf]
        %v451 = vld [vmem:[#allocation7 + $0x2c] sm:$0xf]
        %v452 = vld [vmem:[#allocation7 + $0x30] sm:$0xf]
        %v453 = vld [vmem:[#allocation7 + $0x34] sm:$0xf]
        %v454 = vld [vmem:[#allocation7 + $0x38] sm:$0xf]
        %v455 = vld [vmem:[#allocation7 + $0x3c] sm:$0xf]
        %v456 = vld [vmem:[#allocation7 + $0x40] sm:$0xf]
        %v457 = vld [vmem:[#allocation7 + $0x44] sm:$0xf]
        %v458 = vld [vmem:[#allocation7 + $0x48] sm:$0xf]
        %v459 = vld [vmem:[#allocation7 + $0x4c] sm:$0xf]
        %v460 = vld [vmem:[#allocation7 + $0x50] sm:$0xf]
        %v461 = vld [vmem:[#allocation7 + $0x54] sm:$0xf]
        %v462 = vld [vmem:[#allocation7 + $0x58] sm:$0xf]
        %v463 = vld [vmem:[#allocation7 + $0x5c] sm:$0xf]
        %v464 = vld [vmem:[#allocation7 + $0x60] sm:$0xf]
        %v465 = vld [vmem:[#allocation7 + $0x64] sm:$0xf]
        %v466 = vld [vmem:[#allocation7 + $0x68] sm:$0xf]
        %v467 = vld [vmem:[#allocation7 + $0x6c] sm:$0xf]
        %v468 = vld [vmem:[#allocation7 + $0x70] sm:$0xf]
        %v469 = vld [vmem:[#allocation7 + $0x74] sm:$0xf]
        %v470 = vld [vmem:[#allocation7 + $0x78] sm:$0xf]
        %v471 = vld [vmem:[#allocation7 + $0x7c] sm:$0xf]
        %v473 = vlaneseq
        %v474 = vshrl.u32 %v473, 7
        %v475 = vsub.s32 0, %v474
        %v476 = vrot.slane %v327, %v475
        %v510 = vunpack.c.l.b16 %v440
        %v511 = vunpack.c.l.b16 %v441
        %v512 = vunpack.c.l.b16 %v442
        %v513 = vunpack.c.l.b16 %v443
        %v514 = vunpack.c.l.b16 %v444
        %v515 = vunpack.c.l.b16 %v445
        %v516 = vunpack.c.l.b16 %v446
        %v517 = vunpack.c.l.b16 %v447
        %v518 = vunpack.c.l.b16 %v448
        %v519 = vunpack.c.l.b16 %v449
        %v520 = vunpack.c.l.b16 %v450
        %v521 = vunpack.c.l.b16 %v451
        %v522 = vunpack.c.l.b16 %v452
        %v523 = vunpack.c.l.b16 %v453
        %v524 = vunpack.c.l.b16 %v454
        %v525 = vunpack.c.l.b16 %v455
        %v526 = vunpack.c.l.b16 %v456
        %v527 = vunpack.c.l.b16 %v457
        %v528 = vunpack.c.l.b16 %v458
        %v529 = vunpack.c.l.b16 %v459
        %v530 = vunpack.c.l.b16 %v460
        %v531 = vunpack.c.l.b16 %v461
        %v532 = vunpack.c.l.b16 %v462
        %v533 = vunpack.c.l.b16 %v463
        %v534 = vunpack.c.l.b16 %v464
        %v535 = vunpack.c.l.b16 %v465
        %v536 = vunpack.c.l.b16 %v466
        %v537 = vunpack.c.l.b16 %v467
        %v538 = vunpack.c.l.b16 %v468
        %v539 = vunpack.c.l.b16 %v469
        %v540 = vunpack.c.l.b16 %v470
        %v541 = vunpack.c.l.b16 %v471
        %v542 = vpack.c.b16 %v511, %v510
        %v543 = vpack.c.b16 %v513, %v512
        %v544 = vpack.c.b16 %v515, %v514
        %v545 = vpack.c.b16 %v517, %v516
        %v546 = vpack.c.b16 %v519, %v518
        %v547 = vpack.c.b16 %v521, %v520
        %v548 = vpack.c.b16 %v523, %v522
        %v549 = vpack.c.b16 %v525, %v524
        %v550 = vpack.c.b16 %v527, %v526
        %v551 = vpack.c.b16 %v529, %v528
        %v552 = vpack.c.b16 %v531, %v530
        %v553 = vpack.c.b16 %v533, %v532
        %v554 = vpack.c.b16 %v535, %v534
        %v555 = vpack.c.b16 %v537, %v536
        %v556 = vpack.c.b16 %v539, %v538
        %v557 = vpack.c.b16 %v541, %v540
        %574 = vmatprep.subr.bf16.mxu0 0
        %575 = vmatpush1.bf16.msra.mxu0 %v542
        %576 = vmatprep.subr.bf16.mxu0 0
        %577 = vmatpush1.bf16.msra.mxu0 %v543
        %578 = vmatprep.subr.bf16.mxu0 0
        %579 = vmatpush1.bf16.msra.mxu0 %v544
        %580 = vmatprep.subr.bf16.mxu0 0
        %581 = vmatpush1.bf16.msra.mxu0 %v545
        %582 = vmatprep.subr.bf16.mxu0 0
        %583 = vmatpush1.bf16.msra.mxu0 %v546
        %584 = vmatprep.subr.bf16.mxu0 0
        %585 = vmatpush1.bf16.msra.mxu0 %v547
        %586 = vmatprep.subr.bf16.mxu0 0
        %587 = vmatpush1.bf16.msra.mxu0 %v548
        %588 = vmatprep.subr.bf16.mxu0 0
        %589 = vmatpush1.bf16.msra.mxu0 %v549
        %590 = vmatprep.subr.bf16.mxu0 0
        %591 = vmatpush1.bf16.msra.mxu0 %v550
        %592 = vmatprep.subr.bf16.mxu0 0
        %593 = vmatpush1.bf16.msra.mxu0 %v551
        %594 = vmatprep.subr.bf16.mxu0 0
        %595 = vmatpush1.bf16.msra.mxu0 %v552
        %596 = vmatprep.subr.bf16.mxu0 0
        %597 = vmatpush1.bf16.msra.mxu0 %v553
        %598 = vmatprep.subr.bf16.mxu0 0
        %599 = vmatpush1.bf16.msra.mxu0 %v554
        %600 = vmatprep.subr.bf16.mxu0 0
        %601 = vmatpush1.bf16.msra.mxu0 %v555
        %602 = vmatprep.subr.bf16.mxu0 0
        %603 = vmatpush1.bf16.msra.mxu0 %v556
        %604 = vmatprep.subr.bf16.mxu0 0
        %605 = vmatpush1.bf16.msra.mxu0 %v557
        %606 = vmatprep.mubr.bf16.mxu0 %v439
        %607 = vmatmul.mubr.bf16.gmra.mrb[0].mxu0 %v438
        %v608 = vpop.f32.mrb[0].mxu0
        %v609 = vadd.f32 %v476, %v608
        %v610 = vpop.f32.mrb[0].mxu0
        %v611 = vpop.f32.mrb[0].mxu0
        %v612 = vpop.f32.mrb[0].mxu0
        %613 = vdwg.mxu0
        %v614 = vmax.f32 %v609, 0.0
        %v615 = vpack.c.bf16 %v614, %v614
        %v616 = vld [vmem:[#allocation8] sm:$0xf]
        %v617 = vld [vmem:[#allocation8 + $0x4] sm:$0xf]
        %v618 = vld [vmem:[#allocation8 + $0x8] sm:$0xf]
        %v619 = vld [vmem:[#allocation8 + $0xc] sm:$0xf]
        %v620 = vld [vmem:[#allocation8 + $0x10] sm:$0xf]
        %v621 = vld [vmem:[#allocation8 + $0x14] sm:$0xf]
        %v622 = vld [vmem:[#allocation8 + $0x18] sm:$0xf]
        %v623 = vld [vmem:[#allocation8 + $0x1c] sm:$0xf]
        %v624 = vld [vmem:[#allocation8 + $0x20] sm:$0xf]
        %v625 = vld [vmem:[#allocation8 + $0x24] sm:$0xf]
        %v626 = vld [vmem:[#allocation8 + $0x28] sm:$0xf]
        %v627 = vld [vmem:[#allocation8 + $0x2c] sm:$0xf]
        %v628 = vld [vmem:[#allocation8 + $0x30] sm:$0xf]
        %v629 = vld [vmem:[#allocation8 + $0x34] sm:$0xf]
        %v630 = vld [vmem:[#allocation8 + $0x38] sm:$0xf]
        %v631 = vld [vmem:[#allocation8 + $0x3c] sm:$0xf]
        %v633 = vlaneseq
        %v634 = vshrl.u32 %v633, 7
        %v635 = vsub.s32 0, %v634
        %v636 = vrot.slane %v328, %v635
        %v654 = vunpack.c.l.b16 %v616
        %v655 = vunpack.c.l.b16 %v617
        %v656 = vunpack.c.l.b16 %v618
        %v657 = vunpack.c.l.b16 %v619
        %v658 = vunpack.c.l.b16 %v620
        %v659 = vunpack.c.l.b16 %v621
        %v660 = vunpack.c.l.b16 %v622
        %v661 = vunpack.c.l.b16 %v623
        %v662 = vunpack.c.l.b16 %v624
        %v663 = vunpack.c.l.b16 %v625
        %v664 = vunpack.c.l.b16 %v626
        %v665 = vunpack.c.l.b16 %v627
        %v666 = vunpack.c.l.b16 %v628
        %v667 = vunpack.c.l.b16 %v629
        %v668 = vunpack.c.l.b16 %v630
        %v669 = vunpack.c.l.b16 %v631
        %v670 = vpack.c.b16 %v655, %v654
        %v671 = vpack.c.b16 %v657, %v656
        %v672 = vpack.c.b16 %v659, %v658
        %v673 = vpack.c.b16 %v661, %v660
        %v674 = vpack.c.b16 %v663, %v662
        %v675 = vpack.c.b16 %v665, %v664
        %v676 = vpack.c.b16 %v667, %v666
        %v677 = vpack.c.b16 %v669, %v668
        %686 = vmatprep.subr.bf16.mxu0 0
        %687 = vmatpush1.bf16.msra.mxu0 %v670
        %688 = vmatprep.subr.bf16.mxu0 0
        %689 = vmatpush1.bf16.msra.mxu0 %v671
        %690 = vmatprep.subr.bf16.mxu0 0
        %691 = vmatpush1.bf16.msra.mxu0 %v672
        %692 = vmatprep.subr.bf16.mxu0 0
        %693 = vmatpush1.bf16.msra.mxu0 %v673
        %694 = vmatprep.subr.bf16.mxu0 0
        %695 = vmatpush1.bf16.msra.mxu0 %v674
        %696 = vmatprep.subr.bf16.mxu0 0
        %697 = vmatpush1.bf16.msra.mxu0 %v675
        %698 = vmatprep.subr.bf16.mxu0 0
        %699 = vmatpush1.bf16.msra.mxu0 %v676
        %700 = vmatprep.subr.bf16.mxu0 0
        %701 = vmatpush1.bf16.msra.mxu0 %v677
        %702 = vmatprep.subr.bf16.mxu0 0
        %703 = vmatpush1.bf16.msra.mxu0 0
        %704 = vmatprep.subr.bf16.mxu0 0
        %705 = vmatpush1.bf16.msra.mxu0 0
        %706 = vmatprep.subr.bf16.mxu0 0
        %707 = vmatpush1.bf16.msra.mxu0 0
        %708 = vmatprep.subr.bf16.mxu0 0
        %709 = vmatpush1.bf16.msra.mxu0 0
        %710 = vmatprep.subr.bf16.mxu0 0
        %711 = vmatpush1.bf16.msra.mxu0 0
        %712 = vmatprep.subr.bf16.mxu0 0
        %713 = vmatpush1.bf16.msra.mxu0 0
        %714 = vmatprep.subr.bf16.mxu0 0
        %715 = vmatpush1.bf16.msra.mxu0 0
        %716 = vmatprep.subr.bf16.mxu0 0
        %717 = vmatpush1.bf16.msra.mxu0 0
        %718 = vmatprep.mubr.bf16.mxu0 0
        %719 = vmatmul.mubr.bf16.gmra.mrb[0].mxu0 %v615
        %v720 = vpop.f32.mrb[0].mxu0
        %v721 = vadd.f32 %v636, %v720
        %v722 = vpop.f32.mrb[0].mxu0
        %v723 = vpop.f32.mrb[0].mxu0
        %v724 = vpop.f32.mrb[0].mxu0
        %725 = vdwg.mxu0
        %v726 = vmax.f32 %v721, 0.0
        %v727 = vpack.c.bf16 %v726, %v726
        %v728 = vld [vmem:[#allocation10] sm:$0xf]
        %v729 = vld [vmem:[#allocation10 + $0x4] sm:$0xf]
        %v730 = vld [vmem:[#allocation10 + $0x8] sm:$0xf]
        %v731 = vld [vmem:[#allocation10 + $0xc] sm:$0xf]
        %v732 = vld [vmem:[#allocation10 + $0x10] sm:$0xf]
        %v733 = vld [vmem:[#allocation10 + $0x14] sm:$0xf]
        %v734 = vld [vmem:[#allocation10 + $0x18] sm:$0xf]
        %v735 = vld [vmem:[#allocation10 + $0x1c] sm:$0xf]
        %v736 = vld [vmem:[#allocation10 + $0x20] sm:$0xf]
        %v737 = vld [vmem:[#allocation10 + $0x24] sm:$0xf]
        %v738 = vld [vmem:[#allocation10 + $0x28] sm:$0xf]
        %v739 = vld [vmem:[#allocation10 + $0x2c] sm:$0xf]
        %v740 = vld [vmem:[#allocation10 + $0x30] sm:$0xf]
        %v741 = vld [vmem:[#allocation10 + $0x34] sm:$0xf]
        %v742 = vld [vmem:[#allocation10 + $0x38] sm:$0xf]
        %v743 = vld [vmem:[#allocation10 + $0x3c] sm:$0xf]
        %v745 = vlaneseq
        %v746 = vshrl.u32 %v745, 7
        %v747 = vsub.s32 0, %v746
        %v748 = vrot.slane %v329, %v747
        %v766 = vunpack.c.l.b16 %v728
        %v767 = vunpack.c.l.b16 %v729
        %v768 = vunpack.c.l.b16 %v730
        %v769 = vunpack.c.l.b16 %v731
        %v770 = vunpack.c.l.b16 %v732
        %v771 = vunpack.c.l.b16 %v733
        %v772 = vunpack.c.l.b16 %v734
        %v773 = vunpack.c.l.b16 %v735
        %v774 = vunpack.c.l.b16 %v736
        %v775 = vunpack.c.l.b16 %v737
        %v776 = vunpack.c.l.b16 %v738
        %v777 = vunpack.c.l.b16 %v739
        %v778 = vunpack.c.l.b16 %v740
        %v779 = vunpack.c.l.b16 %v741
        %v780 = vunpack.c.l.b16 %v742
        %v781 = vunpack.c.l.b16 %v743
        %v782 = vpack.c.b16 %v767, %v766
        %v783 = vpack.c.b16 %v769, %v768
        %v784 = vpack.c.b16 %v771, %v770
        %v785 = vpack.c.b16 %v773, %v772
        %v786 = vpack.c.b16 %v775, %v774
        %v787 = vpack.c.b16 %v777, %v776
        %v788 = vpack.c.b16 %v779, %v778
        %v789 = vpack.c.b16 %v781, %v780
        %798 = vmatprep.subr.bf16.mxu0 0
        %799 = vmatpush1.bf16.msra.mxu0 %v782
        %800 = vmatprep.subr.bf16.mxu0 0
        %801 = vmatpush1.bf16.msra.mxu0 %v783
        %802 = vmatprep.subr.bf16.mxu0 0
        %803 = vmatpush1.bf16.msra.mxu0 %v784
        %804 = vmatprep.subr.bf16.mxu0 0
        %805 = vmatpush1.bf16.msra.mxu0 %v785
        %806 = vmatprep.subr.bf16.mxu0 0
        %807 = vmatpush1.bf16.msra.mxu0 %v786
        %808 = vmatprep.subr.bf16.mxu0 0
        %809 = vmatpush1.bf16.msra.mxu0 %v787
        %810 = vmatprep.subr.bf16.mxu0 0
        %811 = vmatpush1.bf16.msra.mxu0 %v788
        %812 = vmatprep.subr.bf16.mxu0 0
        %813 = vmatpush1.bf16.msra.mxu0 %v789
        %814 = vmatprep.subr.bf16.mxu0 0
        %815 = vmatpush1.bf16.msra.mxu0 0
        %816 = vmatprep.subr.bf16.mxu0 0
        %817 = vmatpush1.bf16.msra.mxu0 0
        %818 = vmatprep.subr.bf16.mxu0 0
        %819 = vmatpush1.bf16.msra.mxu0 0
        %820 = vmatprep.subr.bf16.mxu0 0
        %821 = vmatpush1.bf16.msra.mxu0 0
        %822 = vmatprep.subr.bf16.mxu0 0
        %823 = vmatpush1.bf16.msra.mxu0 0
        %824 = vmatprep.subr.bf16.mxu0 0
        %825 = vmatpush1.bf16.msra.mxu0 0
        %826 = vmatprep.subr.bf16.mxu0 0
        %827 = vmatpush1.bf16.msra.mxu0 0
        %828 = vmatprep.subr.bf16.mxu0 0
        %829 = vmatpush1.bf16.msra.mxu0 0
        %830 = vmatprep.mubr.bf16.mxu0 0
        %831 = vmatmul.mubr.bf16.gmra.mrb[0].mxu0 %v727
        %v832 = vpop.f32.mrb[0].mxu0
        %v833 = vadd.f32 %v748, %v832
        %v834 = vpop.f32.mrb[0].mxu0
        %v835 = vpop.f32.mrb[0].mxu0
        %v836 = vpop.f32.mrb[0].mxu0
        %837 = vdwg.mxu0
        %v838 = vpack.c.bf16 %v833, %v833
        %839 = vst [vmem:[%s324] sm:$0xf] %v838
        %s840 = sand.u32 %s164, 1
        %s841 = scalar_lea.sflag [#allocation4], %s840
        %s842 = sand.u32 %s164, 1
        %s843 = smul.addr %s842, 4
        %s844 = scalar_lea.vmem [#allocation11], %s843
        // Predicated region
        $region65: #{tpu_custom_call.1} parent=43 // pred_check
          %p845 = pneg %p174
        $region66: #{tpu_custom_call.1} parent=43 // pred_check_branch
          %847 = sbr.rel (%p845) target = $region68
        $region67: #{tpu_custom_call.1} parent=43 // pred_region
          %s849 = ssub.s32 64, 64
          %850 = vsyncadd %s841, %s849
          %s851 = smul.addr %s25, 64
          %s852 = scalar_lea.hbm %s6, %s851
          %s854 = sshll.u32 %s844, 4
          %s855 = int_to_ptr.vmem [resolvable:$true] %s854
          %857 = dma.vmem_to_hbm [thread:$0]  %s855, 64, %s852, %s841
        $region68: #{tpu_custom_call.1} parent=43 // pred_fallthru
          _
      $region44: #{tpu_custom_call.1} parent=5 // pred_fallthru
        _
      %p858 = scmp.le.s32.totalorder 2, %s20
      // Predicated region
      $region69: #{tpu_custom_call.1} parent=5 // pred_check
        %p859 = pneg %p858
      $region70: #{tpu_custom_call.1} parent=5 // pred_check_branch
        %861 = sbr.rel (%p859) target = $region72
      $region71: #{tpu_custom_call.1} parent=5 // pred_region
        %s862 = ssub.s32 %s20, 2
        // Predicated region
        $region73: #{tpu_custom_call.1} parent=71 // pred_check
          %p863 = pneg %p180
        $region74: #{tpu_custom_call.1} parent=71 // pred_check_branch
          %865 = sbr.rel (%p863) target = $region76
        $region75: #{tpu_custom_call.1} parent=71 // pred_region
          %s866 = sand.u32 %s165, 1
          %s867 = scalar_lea.sflag [#allocation4], %s866
          %s868 = sand.u32 %s165, 1
          %s869 = smul.addr %s868, 4
          %s870 = scalar_lea.vmem [#allocation11], %s869
          %871 = dma.done %s867, 64
        $region76: #{tpu_custom_call.1} parent=71 // pred_fallthru
          _
      $region72: #{tpu_custom_call.1} parent=5 // pred_fallthru
        _
    $region6: #{tpu_custom_call.1} parent=1 // loop_footer
      %s24 = sadd.s32 1, %s20
    $region7: #{tpu_custom_call.1} parent=1 // loop_footer_branch
      %19 = sbr.rel target = $region3
    $region8: #{tpu_custom_call.1} parent=1 // loop_exit
      _
    %872 = vsyncpa [#allocation3], 1
    %s873 = scalar_lea.sflag [#allocation3], 1
    %874 = vsyncpa %s873, 1
    %875 = vsyncpa [#allocation6], 1
    %876 = vsyncpa [#allocation9], 1
    %877 = vsyncpa [#allocation4], 1
    %s878 = scalar_lea.sflag [#allocation4], 1
    %879 = vsyncpa %s878, 1

</llo_original>
